<compile_context>
chip_gen: v6e
topology: v6e:2x2x1
jax: 0.10.0
libtpu: 0.0.40
codegen_flags: <defaults>
</compile_context>

<pallas_src>
import functools

import jax
import jax.numpy as jnp
from jax.experimental import pallas as pl
from jax.experimental.pallas import tpu as pltpu


_HIDDEN = (1024, 512, 256, 128, 64)


def _round_up(x, m):
    return ((x + m - 1) // m) * m


def _landmark_encoder_kernel(x_ref, w1_ref, w2_ref, w3_ref, w4_ref, w5_ref,
                             w6_ref, b_ref, o_ref, *, widths):
    """One batch tile through the full MLP (5 hidden layers + linear head)."""
    h = x_ref[...]                                  # (TM, input_size) bf16
    w_refs = (w1_ref, w2_ref, w3_ref, w4_ref, w5_ref, w6_ref)
    for i, (w_ref, width) in enumerate(zip(w_refs, widths)):
        # bf16 operands into the MXU, f32 accumulation.
        z = jnp.dot(h, w_ref[...], preferred_element_type=jnp.float32)
        z = z + b_ref[i:i + 1, :width]              # f32 bias add (row broadcast)
        if i < 4:
            h = jnp.maximum(z, 0.0).astype(jnp.bfloat16)   # ReLU -> bf16 carry
        elif i == 4:
            h = jnp.tanh(z).astype(jnp.bfloat16)           # Tanh (f32 EUP) -> bf16
        else:
            o_ref[...] = z                          # (TM, OUT_W) lane-dense f32 store


def init_landmark_encoder_params(key, input_size, matrix_dims, dtype=jnp.float32):
    """Deterministic synthetic init matching the PyTorch module's layer shapes."""
    total_output_size = sum(m * n for m, n in matrix_dims)
    dims = [input_size, *_HIDDEN, total_output_size]
    params = []
    for i in range(len(dims) - 1):
        fan_in, fan_out = dims[i], dims[i + 1]
        key, wk, bk = jax.random.split(key, 3)
        bound = 1.0 / (float(fan_in) ** 0.5)
        w = jax.random.uniform(wk, (fan_in, fan_out), dtype, -bound, bound)
        b = jax.random.uniform(bk, (fan_out,), dtype, -bound, bound)
        params.append((w, b))
    return params


def prepare_encoder_params(params, matrix_dims):
    """One-time packing of parameters for the kernel:
    bf16 weights (head zero-padded to a lane-dense 128-multiple width) and a
    single padded f32 bias buffer (one DMA descriptor for all six biases)."""
    total = sum(m * n for m, n in matrix_dims)
    out_w = _round_up(max(total, 1), 128)      # lane-dense padded head width
    bias_w = max(1024, out_w)

    w_bf16 = []
    bias_rows = []
    for i, (w, b) in enumerate(params):
        w = w.astype(jnp.float32)
        b = jnp.reshape(b, (-1,)).astype(jnp.float32)
        if i == len(params) - 1:
            w = jnp.pad(w, ((0, 0), (0, out_w - w.shape[1])))
            b = jnp.pad(b, (0, out_w - b.shape[0]))
        w_bf16.append(w.astype(jnp.bfloat16))
        bias_rows.append(jnp.pad(b, (0, bias_w - b.shape[0])))

    bias_buf = jnp.zeros((8, bias_w), jnp.float32)
    bias_buf = bias_buf.at[:len(bias_rows)].set(jnp.stack(bias_rows))
    widths = tuple(int(w.shape[1]) for w in w_bf16)
    return tuple(w_bf16), bias_buf, widths, out_w, total


def _tm_cap():
    """Per-chip batch-tile cap: 512 on v6e/v7x (amortize per-step overhead),
    256 on v5e (step is already ~2 us at 197 TF/s; single vst slot)."""
    try:
        kind = jax.devices()[0].device_kind.lower()
    except Exception:
        return 512
    if "v5 lite" in kind or "v5e" in kind or "v5litepod" in kind:
        return 256
    return 512


def _choose_tm(batch, cap):
    """TM: multiple of 16 (bf16 sublane pack), minimal padding, and >=2 grid
    steps for moderate batches so both v7x TensorCores get work."""
    batch = max(batch, 1)
    if batch <= 16:
        return _round_up(batch, 16)
    steps = max(pl.cdiv(batch, cap), 2 if batch >= 32 else 1)
    return min(_round_up(pl.cdiv(batch, steps), 16), cap)


def landmark_encoder_forward(x, prepared, matrix_dims):
    """x: (B, input_size) f32.  Returns list of (B, m, n) f32 arrays."""
    w_bf16, bias_buf, widths, out_w, total = prepared
    B, input_size = x.shape

    tm = _choose_tm(B, _tm_cap())
    b_pad = _round_up(B, tm)

    x = x.astype(jnp.bfloat16)                 # cast once; halves streamed bytes
    if b_pad != B:
        x = jnp.pad(x, ((0, b_pad - B), (0, 0)))

    const = lambda i: (0, 0)   # weights/biases: resident across grid steps
    kernel = functools.partial(_landmark_encoder_kernel, widths=widths)

    latent = pl.pallas_call(
        kernel,
        out_shape=jax.ShapeDtypeStruct((b_pad, out_w), jnp.float32),
        grid_spec=pltpu.PrefetchScalarGridSpec(
            num_scalar_prefetch=0,
            grid=(b_pad // tm,),
            in_specs=[pl.BlockSpec((tm, input_size), lambda i: (i, 0))]
                     + [pl.BlockSpec(w.shape, const) for w in w_bf16]
                     + [pl.BlockSpec(bias_buf.shape, const)],
            out_specs=pl.BlockSpec((tm, out_w), lambda i: (i, 0)),
        ),
        compiler_params=pltpu.CompilerParams(
            dimension_semantics=("parallel",),
            vmem_limit_bytes=16 << 20,
        ),
    )(x, *w_bf16, bias_buf)

    # TODO(synk): for the per-frame (B=2) use case this call is entirely
    # weight-DMA / launch bound; keep the ~1.7 MiB of bf16 weights VMEM-resident
    # across calls (cross-pallas_call SEMAPHORE+VMEM future) or batch frames.

    latent = latent[:B, :total]
    # Glue: split latent into per-matrix views (matches torch .view(-1, m, n)).
    matrices = []
    start = 0
    for m, n in matrix_dims:
        size = m * n
        matrices.append(latent[:, start:start + size].reshape(-1, m, n))
        start += size
    return matrices


def landmark_encoder_reference(x, params, matrix_dims):
    """Pure-JAX reference using the same bf16-matmul / f32-accumulate math."""
    h = x.astype(jnp.float32)
    for i, (w, b) in enumerate(params):
        z = jnp.dot(h.astype(jnp.bfloat16), w.astype(jnp.bfloat16),
                    preferred_element_type=jnp.float32)
        z = z + jnp.reshape(b, (1, -1)).astype(jnp.float32)
        if i < 4:
            h = jnp.maximum(z, 0.0)
        elif i == 4:
            h = jnp.tanh(z)
        else:
            h = z
    matrices = []
    start = 0
    for m, n in matrix_dims:
        size = m * n
        matrices.append(h[:, start:start + size].reshape(-1, m, n))
        start += size
    return matrices


if __name__ == "__main__":
    key = jax.random.PRNGKey(0)

    # Module-consistent small shapes: 68 2-D landmarks flattened -> 136 inputs;
    # output matrices: a 3x3 rotation-like matrix and a 3x1 translation.
    batch = 2
    input_size = 136
    matrix_dims = [(3, 3), (3, 1)]

    key, xk, pk = jax.random.split(key, 3)
    x = jax.random.normal(xk, (batch, input_size), jnp.float32)
    params = init_landmark_encoder_params(pk, input_size, matrix_dims)
    prepared = prepare_encoder_params(params, matrix_dims)

    mats = landmark_encoder_forward(x, prepared, matrix_dims)
    mats = jax.block_until_ready(mats)

    # Correctness check vs. a pure-JAX reference with identical numerics.
    ref = landmark_encoder_reference(x, params, matrix_dims)
    for got, want, (m, n) in zip(mats, ref, matrix_dims):
        assert got.shape == (batch, m, n), got.shape
        assert jnp.allclose(got, want, atol=2e-3, rtol=2e-3), "mismatch vs reference"

    print("KERNEL_OK")
</pallas_src>

<mosaic_0001>
module attributes {stable_mosaic.version = 11 : i64} {
  func.func @_landmark_encoder_kernel(%arg0: i32, %arg1: memref<16x136xbf16, #tpu.memory_space<vmem>>, %arg2: memref<136x1024xbf16, #tpu.memory_space<vmem>>, %arg3: memref<1024x512xbf16, #tpu.memory_space<vmem>>, %arg4: memref<512x256xbf16, #tpu.memory_space<vmem>>, %arg5: memref<256x128xbf16, #tpu.memory_space<vmem>>, %arg6: memref<128x64xbf16, #tpu.memory_space<vmem>>, %arg7: memref<64x128xbf16, #tpu.memory_space<vmem>>, %arg8: memref<8x1024xf32, #tpu.memory_space<vmem>>, %arg9: memref<16x128xf32, #tpu.memory_space<vmem>>) attributes {dimension_semantics = [#tpu.dimension_semantics<parallel>], iteration_bounds = array<i64: 1>, scalar_prefetch = 0 : i64, scratch_operands = 0 : i64, tpu.core_type = #tpu.core_type<tc>, window_params = [{transform_indices = @transform_0, window_bounds = array<i64: 16, 136>}, {pipeline_mode = #tpu.pipeline_mode<synchronous>, transform_indices = @transform_1, window_bounds = array<i64: 136, 1024>}, {pipeline_mode = #tpu.pipeline_mode<synchronous>, transform_indices = @transform_2, window_bounds = array<i64: 1024, 512>}, {pipeline_mode = #tpu.pipeline_mode<synchronous>, transform_indices = @transform_3, window_bounds = array<i64: 512, 256>}, {pipeline_mode = #tpu.pipeline_mode<synchronous>, transform_indices = @transform_4, window_bounds = array<i64: 256, 128>}, {pipeline_mode = #tpu.pipeline_mode<synchronous>, transform_indices = @transform_5, window_bounds = array<i64: 128, 64>}, {pipeline_mode = #tpu.pipeline_mode<synchronous>, transform_indices = @transform_6, window_bounds = array<i64: 64, 128>}, {pipeline_mode = #tpu.pipeline_mode<synchronous>, transform_indices = @transform_7, window_bounds = array<i64: 8, 1024>}, {transform_indices = @transform_8, window_bounds = array<i64: 16, 128>}]} {
    %c0 = arith.constant 0 : index
    %c0_0 = arith.constant 0 : index
    %0 = vector.load %arg1[%c0, %c0_0] : memref<16x136xbf16, #tpu.memory_space<vmem>>, vector<16x136xbf16>
    %c0_1 = arith.constant 0 : index
    %c0_2 = arith.constant 0 : index
    %1 = vector.load %arg2[%c0_1, %c0_2] : memref<136x1024xbf16, #tpu.memory_space<vmem>>, vector<136x1024xbf16>
    %cst = arith.constant dense<0.000000e+00> : vector<16x1024xf32>
    %2 = tpu.matmul %0, %1, %cst {dimension_numbers = #tpu.dot_dimension_numbers<[1], [0], [0], [1], [0, 0, 1, 1], [], []>} : vector<16x136xbf16>, vector<136x1024xbf16>, vector<16x1024xf32> -> vector<16x1024xf32>
    %c0_3 = arith.constant 0 : index
    %c0_4 = arith.constant 0 : index
    %3 = vector.load %arg8[%c0_3, %c0_4] : memref<8x1024xf32, #tpu.memory_space<vmem>>, vector<1x1024xf32>
    %4 = vector.broadcast %3 : vector<1x1024xf32> to vector<16x1024xf32>
    %5 = arith.addf %2, %4 : vector<16x1024xf32>
    %cst_5 = arith.constant 0.000000e+00 : f32
    %6 = vector.broadcast %cst_5 : f32 to vector<16x1024xf32>
    %7 = arith.maximumf %5, %6 : vector<16x1024xf32>
    %8 = arith.truncf %7 : vector<16x1024xf32> to vector<16x1024xbf16>
    %c0_6 = arith.constant 0 : index
    %c0_7 = arith.constant 0 : index
    %9 = vector.load %arg3[%c0_6, %c0_7] : memref<1024x512xbf16, #tpu.memory_space<vmem>>, vector<1024x512xbf16>
    %cst_8 = arith.constant dense<0.000000e+00> : vector<16x512xf32>
    %10 = tpu.matmul %8, %9, %cst_8 {dimension_numbers = #tpu.dot_dimension_numbers<[1], [0], [0], [1], [0, 0, 1, 1], [], []>} : vector<16x1024xbf16>, vector<1024x512xbf16>, vector<16x512xf32> -> vector<16x512xf32>
    %c1 = arith.constant 1 : index
    %c0_9 = arith.constant 0 : index
    %11 = vector.load %arg8[%c1, %c0_9] : memref<8x1024xf32, #tpu.memory_space<vmem>>, vector<1x512xf32>
    %12 = vector.broadcast %11 : vector<1x512xf32> to vector<16x512xf32>
    %13 = arith.addf %10, %12 : vector<16x512xf32>
    %cst_10 = arith.constant 0.000000e+00 : f32
    %14 = vector.broadcast %cst_10 : f32 to vector<16x512xf32>
    %15 = arith.maximumf %13, %14 : vector<16x512xf32>
    %16 = arith.truncf %15 : vector<16x512xf32> to vector<16x512xbf16>
    %c0_11 = arith.constant 0 : index
    %c0_12 = arith.constant 0 : index
    %17 = vector.load %arg4[%c0_11, %c0_12] : memref<512x256xbf16, #tpu.memory_space<vmem>>, vector<512x256xbf16>
    %cst_13 = arith.constant dense<0.000000e+00> : vector<16x256xf32>
    %18 = tpu.matmul %16, %17, %cst_13 {dimension_numbers = #tpu.dot_dimension_numbers<[1], [0], [0], [1], [0, 0, 1, 1], [], []>} : vector<16x512xbf16>, vector<512x256xbf16>, vector<16x256xf32> -> vector<16x256xf32>
    %c2 = arith.constant 2 : index
    %c0_14 = arith.constant 0 : index
    %19 = vector.load %arg8[%c2, %c0_14] : memref<8x1024xf32, #tpu.memory_space<vmem>>, vector<1x256xf32>
    %20 = vector.broadcast %19 : vector<1x256xf32> to vector<16x256xf32>
    %21 = arith.addf %18, %20 : vector<16x256xf32>
    %cst_15 = arith.constant 0.000000e+00 : f32
    %22 = vector.broadcast %cst_15 : f32 to vector<16x256xf32>
    %23 = arith.maximumf %21, %22 : vector<16x256xf32>
    %24 = arith.truncf %23 : vector<16x256xf32> to vector<16x256xbf16>
    %c0_16 = arith.constant 0 : index
    %c0_17 = arith.constant 0 : index
    %25 = vector.load %arg5[%c0_16, %c0_17] : memref<256x128xbf16, #tpu.memory_space<vmem>>, vector<256x128xbf16>
    %cst_18 = arith.constant dense<0.000000e+00> : vector<16x128xf32>
    %26 = tpu.matmul %24, %25, %cst_18 {dimension_numbers = #tpu.dot_dimension_numbers<[1], [0], [0], [1], [0, 0, 1, 1], [], []>} : vector<16x256xbf16>, vector<256x128xbf16>, vector<16x128xf32> -> vector<16x128xf32>
    %c3 = arith.constant 3 : index
    %c0_19 = arith.constant 0 : index
    %27 = vector.load %arg8[%c3, %c0_19] : memref<8x1024xf32, #tpu.memory_space<vmem>>, vector<1x128xf32>
    %28 = vector.broadcast %27 : vector<1x128xf32> to vector<16x128xf32>
    %29 = arith.addf %26, %28 : vector<16x128xf32>
    %cst_20 = arith.constant 0.000000e+00 : f32
    %30 = vector.broadcast %cst_20 : f32 to vector<16x128xf32>
    %31 = arith.maximumf %29, %30 : vector<16x128xf32>
    %32 = arith.truncf %31 : vector<16x128xf32> to vector<16x128xbf16>
    %c0_21 = arith.constant 0 : index
    %c0_22 = arith.constant 0 : index
    %33 = vector.load %arg6[%c0_21, %c0_22] : memref<128x64xbf16, #tpu.memory_space<vmem>>, vector<128x64xbf16>
    %cst_23 = arith.constant dense<0.000000e+00> : vector<16x64xf32>
    %34 = tpu.matmul %32, %33, %cst_23 {dimension_numbers = #tpu.dot_dimension_numbers<[1], [0], [0], [1], [0, 0, 1, 1], [], []>} : vector<16x128xbf16>, vector<128x64xbf16>, vector<16x64xf32> -> vector<16x64xf32>
    %c4 = arith.constant 4 : index
    %c0_24 = arith.constant 0 : index
    %35 = vector.load %arg8[%c4, %c0_24] : memref<8x1024xf32, #tpu.memory_space<vmem>>, vector<1x64xf32>
    %36 = vector.broadcast %35 : vector<1x64xf32> to vector<16x64xf32>
    %37 = arith.addf %34, %36 : vector<16x64xf32>
    %38 = math.tanh %37 : vector<16x64xf32>
    %39 = arith.truncf %38 : vector<16x64xf32> to vector<16x64xbf16>
    %c0_25 = arith.constant 0 : index
    %c0_26 = arith.constant 0 : index
    %40 = vector.load %arg7[%c0_25, %c0_26] : memref<64x128xbf16, #tpu.memory_space<vmem>>, vector<64x128xbf16>
    %cst_27 = arith.constant dense<0.000000e+00> : vector<16x128xf32>
    %41 = tpu.matmul %39, %40, %cst_27 {dimension_numbers = #tpu.dot_dimension_numbers<[1], [0], [0], [1], [0, 0, 1, 1], [], []>} : vector<16x64xbf16>, vector<64x128xbf16>, vector<16x128xf32> -> vector<16x128xf32>
    %c5 = arith.constant 5 : index
    %c0_28 = arith.constant 0 : index
    %42 = vector.load %arg8[%c5, %c0_28] : memref<8x1024xf32, #tpu.memory_space<vmem>>, vector<1x128xf32>
    %43 = vector.broadcast %42 : vector<1x128xf32> to vector<16x128xf32>
    %44 = arith.addf %41, %43 : vector<16x128xf32>
    %c0_29 = arith.constant 0 : index
    %c0_30 = arith.constant 0 : index
    %45 = vector.load %arg9[%c0_29, %c0_30] : memref<16x128xf32, #tpu.memory_space<vmem>>, vector<16x128xf32>
    tpu.vector_store %arg9[%c0_29, %c0_30], %44 {strides = array<i32>} : memref<16x128xf32, #tpu.memory_space<vmem>>, vector<16x128xf32>,
    return
  }
  func.func @transform_0(%arg0: i32) -> (i32, i32) {
    %c0_i32 = arith.constant 0 : i32
    %c0_i32_0 = arith.constant 0 : i32
    return %arg0, %c0_i32 : i32, i32
  }
  func.func @transform_1(%arg0: i32) -> (i32, i32) {
    %c0_i32 = arith.constant 0 : i32
    %c0_i32_0 = arith.constant 0 : i32
    %c0_i32_1 = arith.constant 0 : i32
    return %c0_i32, %c0_i32_0 : i32, i32
  }
  func.func @transform_2(%arg0: i32) -> (i32, i32) {
    %c0_i32 = arith.constant 0 : i32
    %c0_i32_0 = arith.constant 0 : i32
    %c0_i32_1 = arith.constant 0 : i32
    return %c0_i32, %c0_i32_0 : i32, i32
  }
  func.func @transform_3(%arg0: i32) -> (i32, i32) {
    %c0_i32 = arith.constant 0 : i32
    %c0_i32_0 = arith.constant 0 : i32
    %c0_i32_1 = arith.constant 0 : i32
    return %c0_i32, %c0_i32_0 : i32, i32
  }
  func.func @transform_4(%arg0: i32) -> (i32, i32) {
    %c0_i32 = arith.constant 0 : i32
    %c0_i32_0 = arith.constant 0 : i32
    %c0_i32_1 = arith.constant 0 : i32
    return %c0_i32, %c0_i32_0 : i32, i32
  }
  func.func @transform_5(%arg0: i32) -> (i32, i32) {
    %c0_i32 = arith.constant 0 : i32
    %c0_i32_0 = arith.constant 0 : i32
    %c0_i32_1 = arith.constant 0 : i32
    return %c0_i32, %c0_i32_0 : i32, i32
  }
  func.func @transform_6(%arg0: i32) -> (i32, i32) {
    %c0_i32 = arith.constant 0 : i32
    %c0_i32_0 = arith.constant 0 : i32
    %c0_i32_1 = arith.constant 0 : i32
    return %c0_i32, %c0_i32_0 : i32, i32
  }
  func.func @transform_7(%arg0: i32) -> (i32, i32) {
    %c0_i32 = arith.constant 0 : i32
    %c0_i32_0 = arith.constant 0 : i32
    %c0_i32_1 = arith.constant 0 : i32
    return %c0_i32, %c0_i32_0 : i32, i32
  }
  func.func @transform_8(%arg0: i32) -> (i32, i32) {
    %c0_i32 = arith.constant 0 : i32
    %c0_i32_0 = arith.constant 0 : i32
    return %arg0, %c0_i32 : i32, i32
  }
}

</mosaic_0001>

<llo_original>
// kernel: tpu_custom_call.1
$region0: #{tpu_custom_call.1}
  #allocation0 [shape = 'u32[]', space=smem, size = 0x4, offset = 0x4, fixed_abs, tag = 'smem constant byte address 0x4 - core index']
  #allocation1 [shape = 'u32[144,128]{1,0:T(1,128)}', space=vmem, size = 0x12000, scoped, tag = 'internal scratch']
  %s0 = inlined_call_operand.hbm [shape: bf16[16,136], index: 0, kind: input, shape index: {}]
  %s1 = inlined_call_operand.hbm [shape: bf16[136,1024], index: 1, kind: input, shape index: {}]
  %s2 = inlined_call_operand.hbm [shape: bf16[1024,512], index: 2, kind: input, shape index: {}]
  %s3 = inlined_call_operand.hbm [shape: bf16[512,256], index: 3, kind: input, shape index: {}]
  %s4 = inlined_call_operand.hbm [shape: bf16[256,128], index: 4, kind: input, shape index: {}]
  %s5 = inlined_call_operand.vmem [shape: bf16[128,64], index: 5, kind: input, shape index: {}]
  %s6 = inlined_call_operand.vmem [shape: bf16[64,128], index: 6, kind: input, shape index: {}]
  %s7 = inlined_call_operand.vmem [shape: f32[8,1024], index: 7, kind: input, shape index: {}]
  %s8 = inlined_call_operand.hbm [shape: f32[16,128], index: 8, kind: output, shape index: {}]
  %s9 = sld [smem:[#allocation0]]
  $region62: #{tpu_custom_call.1} parent=0
    _
  %s11 = ssub.s32 1, %s9
  %s12 = scalar_select 0, %s11, %s9
  $region1: #{tpu_custom_call.1} parent=0
    #allocation2 [shape = 'u8[8192]{0}', space=vmem, size = 0x2000, scoped, tag = 'input window, operand 0, single buffered']
    #allocation3 [shape = 's32[1]{0}', space=sflag, size = 0x4, scoped, tag = 'scoped memory for tpu_custom_call.1']
    #allocation4 [shape = 's32[1]{0}', space=sflag, size = 0x4, scoped, tag = 'scoped memory for tpu_custom_call.1']
    #allocation5 [shape = 'u8[278528]{0}', space=vmem, size = 0x44000, scoped, tag = 'input window, operand 1, single buffered']
    #allocation6 [shape = 's32[1]{0}', space=sflag, size = 0x4, scoped, tag = 'scoped memory for tpu_custom_call.1']
    #allocation7 [shape = 'u8[1048576]{0}', space=vmem, size = 0x100000, scoped, tag = 'input window, operand 2, single buffered']
    #allocation8 [shape = 'u8[262144]{0}', space=vmem, size = 0x40000, scoped, tag = 'input window, operand 3, single buffered']
    #allocation9 [shape = 's32[1]{0}', space=sflag, size = 0x4, scoped, tag = 'scoped memory for tpu_custom_call.1']
    #allocation10 [shape = 'u8[65536]{0}', space=vmem, size = 0x10000, scoped, tag = 'input window, operand 4, single buffered']
    #allocation11 [shape = 'u8[8192]{0}', space=vmem, size = 0x2000, scoped, tag = 'output window, operand 0, single buffered']
    %13 = vsyncpa [#allocation3], 0
    %14 = vsyncpa [#allocation6], 0
    %15 = vsyncpa [#allocation9], 0
    %16 = vsyncpa [#allocation4], 0
    // Predicated region
    $region2: #{tpu_custom_call.1} parent=1 // pred_check
      _
    $region3: #{tpu_custom_call.1} parent=1 // pred_check_branch
      %18 = sbr.rel (0) target = $region5
    $region4: #{tpu_custom_call.1} parent=1 // pred_region
      %s20 = ssub.s32 256, 256
      %21 = vsyncadd [#allocation3], %s20
      %s22 = sshll.u32 [#allocation2], 4
      %s23 = int_to_ptr.vmem [resolvable:$true] %s22
      %28 = dma.hbm_to_vmem [thread:$0]  %s0, 256, %s23, [#allocation3], 128, 128, 8
    $region5: #{tpu_custom_call.1} parent=1 // pred_fallthru
      _
    // Predicated region
    $region6: #{tpu_custom_call.1} parent=1 // pred_check
      _
    $region7: #{tpu_custom_call.1} parent=1 // pred_check_branch
      %30 = sbr.rel (0) target = $region9
    $region8: #{tpu_custom_call.1} parent=1 // pred_region
      %s32 = ssub.s32 8704, 8704
      %33 = vsyncadd [#allocation6], %s32
      %s34 = sshll.u32 [#allocation5], 4
      %s35 = int_to_ptr.vmem [resolvable:$true] %s34
      %40 = dma.hbm_to_vmem [thread:$0]  %s1, 8704, %s35, [#allocation6], 512, 512, 32
    $region9: #{tpu_custom_call.1} parent=1 // pred_fallthru
      _
    // Predicated region
    $region10: #{tpu_custom_call.1} parent=1 // pred_check
      _
    $region11: #{tpu_custom_call.1} parent=1 // pred_check_branch
      %42 = sbr.rel (0) target = $region13
    $region12: #{tpu_custom_call.1} parent=1 // pred_region
      %s44 = ssub.s32 32768, 32768
      %45 = vsyncadd [#allocation6], %s44
      %s46 = sshll.u32 [#allocation7], 4
      %s47 = int_to_ptr.vmem [resolvable:$true] %s46
      %52 = dma.hbm_to_vmem [thread:$0]  %s2, 32768, %s47, [#allocation6], 256, 256, 16
    $region13: #{tpu_custom_call.1} parent=1 // pred_fallthru
      _
    // Predicated region
    $region14: #{tpu_custom_call.1} parent=1 // pred_check
      _
    $region15: #{tpu_custom_call.1} parent=1 // pred_check_branch
      %54 = sbr.rel (0) target = $region17
    $region16: #{tpu_custom_call.1} parent=1 // pred_region
      %s56 = ssub.s32 8192, 8192
      %57 = vsyncadd [#allocation9], %s56
      %s58 = sshll.u32 [#allocation8], 4
      %s59 = int_to_ptr.vmem [resolvable:$true] %s58
      %64 = dma.hbm_to_vmem [thread:$0]  %s3, 8192, %s59, [#allocation9], 128, 128, 8
    $region17: #{tpu_custom_call.1} parent=1 // pred_fallthru
      _
    // Predicated region
    $region18: #{tpu_custom_call.1} parent=1 // pred_check
      _
    $region19: #{tpu_custom_call.1} parent=1 // pred_check_branch
      %66 = sbr.rel (0) target = $region21
    $region20: #{tpu_custom_call.1} parent=1 // pred_region
      %s68 = ssub.s32 2048, 2048
      %69 = vsyncadd [#allocation9], %s68
      %s70 = sshll.u32 [#allocation10], 4
      %s71 = int_to_ptr.vmem [resolvable:$true] %s70
      %76 = dma.hbm_to_vmem [thread:$0]  %s4, 2048, %s71, [#allocation9], 64, 64, 4
    $region21: #{tpu_custom_call.1} parent=1 // pred_fallthru
      _
    // Predicated region
    $region22: #{tpu_custom_call.1} parent=1 // pred_check
      _
    $region23: #{tpu_custom_call.1} parent=1 // pred_check_branch
      %78 = sbr.rel (0) target = $region25
    $region24: #{tpu_custom_call.1} parent=1 // pred_region
      _
    $region25: #{tpu_custom_call.1} parent=1 // pred_fallthru
      _
    // Predicated region
    $region26: #{tpu_custom_call.1} parent=1 // pred_check
      _
    $region27: #{tpu_custom_call.1} parent=1 // pred_check_branch
      %80 = sbr.rel (0) target = $region29
    $region28: #{tpu_custom_call.1} parent=1 // pred_region
      _
    $region29: #{tpu_custom_call.1} parent=1 // pred_fallthru
      _
    // Predicated region
    $region30: #{tpu_custom_call.1} parent=1 // pred_check
      _
    $region31: #{tpu_custom_call.1} parent=1 // pred_check_branch
      %82 = sbr.rel (0) target = $region33
    $region32: #{tpu_custom_call.1} parent=1 // pred_region
      _
    $region33: #{tpu_custom_call.1} parent=1 // pred_fallthru
      _
    // Predicated region
    $region34: #{tpu_custom_call.1} parent=1 // pred_check
      _
    $region35: #{tpu_custom_call.1} parent=1 // pred_check_branch
      %84 = sbr.rel (0) target = $region37
    $region36: #{tpu_custom_call.1} parent=1 // pred_region
      %85 = dma.done [#allocation3], 256
    $region37: #{tpu_custom_call.1} parent=1 // pred_fallthru
      _
    // Predicated region
    $region38: #{tpu_custom_call.1} parent=1 // pred_check
      _
    $region39: #{tpu_custom_call.1} parent=1 // pred_check_branch
      %87 = sbr.rel (0) target = $region41
    $region40: #{tpu_custom_call.1} parent=1 // pred_region
      %88 = dma.done [#allocation6], 8704
    $region41: #{tpu_custom_call.1} parent=1 // pred_fallthru
      _
    // Predicated region
    $region42: #{tpu_custom_call.1} parent=1 // pred_check
      _
    $region43: #{tpu_custom_call.1} parent=1 // pred_check_branch
      %90 = sbr.rel (0) target = $region45
    $region44: #{tpu_custom_call.1} parent=1 // pred_region
      %91 = dma.done [#allocation6], 32768
    $region45: #{tpu_custom_call.1} parent=1 // pred_fallthru
      _
    // Predicated region
    $region46: #{tpu_custom_call.1} parent=1 // pred_check
      _
    $region47: #{tpu_custom_call.1} parent=1 // pred_check_branch
      %93 = sbr.rel (0) target = $region49
    $region48: #{tpu_custom_call.1} parent=1 // pred_region
      %94 = dma.done [#allocation9], 8192
    $region49: #{tpu_custom_call.1} parent=1 // pred_fallthru
      _
    // Predicated region
    $region50: #{tpu_custom_call.1} parent=1 // pred_check
      _
    $region51: #{tpu_custom_call.1} parent=1 // pred_check_branch
      %96 = sbr.rel (0) target = $region53
    $region52: #{tpu_custom_call.1} parent=1 // pred_region
      %97 = dma.done [#allocation9], 2048
    $region53: #{tpu_custom_call.1} parent=1 // pred_fallthru
      _
    %v99 = vld [vmem:[#allocation2] sm:$0xff]
    %v100 = vld [vmem:[#allocation2 + $0x8] sm:$0xff]
    %v101 = vld [vmem:[#allocation5] sm:$0xff]
    %v102 = vld [vmem:[#allocation5 + $0x8] sm:$0xff]
    %v103 = vld [vmem:[#allocation5 + $0x10] sm:$0xff]
    %v104 = vld [vmem:[#allocation5 + $0x18] sm:$0xff]
    %v105 = vld [vmem:[#allocation5 + $0x20] sm:$0xff]
    %v106 = vld [vmem:[#allocation5 + $0x28] sm:$0xff]
    %v107 = vld [vmem:[#allocation5 + $0x30] sm:$0xff]
    %v108 = vld [vmem:[#allocation5 + $0x38] sm:$0xff]
    %v109 = vld [vmem:[#allocation5 + $0x40] sm:$0xff]
    %v110 = vld [vmem:[#allocation5 + $0x48] sm:$0xff]
    %v111 = vld [vmem:[#allocation5 + $0x50] sm:$0xff]
    %v112 = vld [vmem:[#allocation5 + $0x58] sm:$0xff]
    %v113 = vld [vmem:[#allocation5 + $0x60] sm:$0xff]
    %v114 = vld [vmem:[#allocation5 + $0x68] sm:$0xff]
    %v115 = vld [vmem:[#allocation5 + $0x70] sm:$0xff]
    %v116 = vld [vmem:[#allocation5 + $0x78] sm:$0xff]
    %v117 = vld [vmem:[#allocation5 + $0x80] sm:$0xff]
    %v118 = vld [vmem:[#allocation5 + $0x88] sm:$0xff]
    %v119 = vld [vmem:[#allocation5 + $0x90] sm:$0xff]
    %v120 = vld [vmem:[#allocation5 + $0x98] sm:$0xff]
    %v121 = vld [vmem:[#allocation5 + $0xa0] sm:$0xff]
    %v122 = vld [vmem:[#allocation5 + $0xa8] sm:$0xff]
    %v123 = vld [vmem:[#allocation5 + $0xb0] sm:$0xff]
    %v124 = vld [vmem:[#allocation5 + $0xb8] sm:$0xff]
    %v125 = vld [vmem:[#allocation5 + $0xc0] sm:$0xff]
    %v126 = vld [vmem:[#allocation5 + $0xc8] sm:$0xff]
    %v127 = vld [vmem:[#allocation5 + $0xd0] sm:$0xff]
    %v128 = vld [vmem:[#allocation5 + $0xd8] sm:$0xff]
    %v129 = vld [vmem:[#allocation5 + $0xe0] sm:$0xff]
    %v130 = vld [vmem:[#allocation5 + $0xe8] sm:$0xff]
    %v131 = vld [vmem:[#allocation5 + $0xf0] sm:$0xff]
    %v132 = vld [vmem:[#allocation5 + $0xf8] sm:$0xff]
    %v133 = vld [vmem:[#allocation5 + $0x100] sm:$0xff]
    %v134 = vld [vmem:[#allocation5 + $0x108] sm:$0xff]
    %v135 = vld [vmem:[#allocation5 + $0x110] sm:$0xff]
    %v136 = vld [vmem:[#allocation5 + $0x118] sm:$0xff]
    %v137 = vld [vmem:[#allocation5 + $0x120] sm:$0xff]
    %v138 = vld [vmem:[#allocation5 + $0x128] sm:$0xff]
    %v139 = vld [vmem:[#allocation5 + $0x130] sm:$0xff]
    %v140 = vld [vmem:[#allocation5 + $0x138] sm:$0xff]
    %v141 = vld [vmem:[#allocation5 + $0x140] sm:$0xff]
    %v142 = vld [vmem:[#allocation5 + $0x148] sm:$0xff]
    %v143 = vld [vmem:[#allocation5 + $0x150] sm:$0xff]
    %v144 = vld [vmem:[#allocation5 + $0x158] sm:$0xff]
    %v145 = vld [vmem:[#allocation5 + $0x160] sm:$0xff]
    %v146 = vld [vmem:[#allocation5 + $0x168] sm:$0xff]
    %v147 = vld [vmem:[#allocation5 + $0x170] sm:$0xff]
    %v148 = vld [vmem:[#allocation5 + $0x178] sm:$0xff]
    %v149 = vld [vmem:[#allocation5 + $0x180] sm:$0xff]
    %v150 = vld [vmem:[#allocation5 + $0x188] sm:$0xff]
    %v151 = vld [vmem:[#allocation5 + $0x190] sm:$0xff]
    %v152 = vld [vmem:[#allocation5 + $0x198] sm:$0xff]
    %v153 = vld [vmem:[#allocation5 + $0x1a0] sm:$0xff]
    %v154 = vld [vmem:[#allocation5 + $0x1a8] sm:$0xff]
    %v155 = vld [vmem:[#allocation5 + $0x1b0] sm:$0xff]
    %v156 = vld [vmem:[#allocation5 + $0x1b8] sm:$0xff]
    %v157 = vld [vmem:[#allocation5 + $0x1c0] sm:$0xff]
    %v158 = vld [vmem:[#allocation5 + $0x1c8] sm:$0xff]
    %v159 = vld [vmem:[#allocation5 + $0x1d0] sm:$0xff]
    %v160 = vld [vmem:[#allocation5 + $0x1d8] sm:$0xff]
    %v161 = vld [vmem:[#allocation5 + $0x1e0] sm:$0xff]
    %v162 = vld [vmem:[#allocation5 + $0x1e8] sm:$0xff]
    %v163 = vld [vmem:[#allocation5 + $0x1f0] sm:$0xff]
    %v164 = vld [vmem:[#allocation5 + $0x1f8] sm:$0xff]
    %v165 = vld [vmem:[#allocation5 + $0x200] sm:$0xff]
    %v166 = vld [vmem:[#allocation5 + $0x208] sm:$0xff]
    %v167 = vld [vmem:[#allocation5 + $0x210] sm:$0xff]
    %v168 = vld [vmem:[#allocation5 + $0x218] sm:$0xff]
    %v169 = vld [vmem:[%s7] ss:$8 sm:$0xf]
    %v170 = vld [vmem:[%s7] ss:$8 sm:$0xf0]
    %v171 = vor.u32 %v169, %v170
    %v173 = vlaneseq
    %v174 = vshrl.u32 %v173, 7
    %v175 = vsub.s32 0, %v174
    %v176 = vrot.slane %v171, %v175
    %v177 = vlaneseq
    %v178 = vshrl.u32 %v177, 7
    %v179 = vsub.s32 1, %v178
    %v180 = vrot.slane %v171, %v179
    %v181 = vlaneseq
    %v182 = vshrl.u32 %v181, 7
    %v183 = vsub.s32 2, %v182
    %v184 = vrot.slane %v171, %v183
    %v185 = vlaneseq
    %v186 = vshrl.u32 %v185, 7
    %v187 = vsub.s32 3, %v186
    %v188 = vrot.slane %v171, %v187
    %v189 = vlaneseq
    %v190 = vshrl.u32 %v189, 7
    %v191 = vsub.s32 4, %v190
    %v192 = vrot.slane %v171, %v191
    %v193 = vlaneseq
    %v194 = vshrl.u32 %v193, 7
    %v195 = vsub.s32 5, %v194
    %v196 = vrot.slane %v171, %v195
    %v197 = vlaneseq
    %v198 = vshrl.u32 %v197, 7
    %v199 = vsub.s32 6, %v198
    %v200 = vrot.slane %v171, %v199
    %v201 = vlaneseq
    %v202 = vshrl.u32 %v201, 7
    %v203 = vsub.s32 7, %v202
    %v204 = vrot.slane %v171, %v203
    %v215 = vunpack.c.l.b16 %v99
    %v216 = vunpack.c.h.b16 %v99
    %v217 = vunpack.c.l.b16 %v100
    %v218 = vunpack.c.h.b16 %v100
    %v219 = vpack.c.b16 %v217, %v215
    %v220 = vpack.c.b16 %v218, %v216
    %v290 = vunpack.c.l.b16 %v101
    %v291 = vunpack.c.h.b16 %v101
    %v292 = vunpack.c.l.b16 %v102
    %v293 = vunpack.c.h.b16 %v102
    %v294 = vunpack.c.l.b16 %v103
    %v295 = vunpack.c.h.b16 %v103
    %v296 = vunpack.c.l.b16 %v104
    %v297 = vunpack.c.h.b16 %v104
    %v298 = vunpack.c.l.b16 %v105
    %v299 = vunpack.c.h.b16 %v105
    %v300 = vunpack.c.l.b16 %v106
    %v301 = vunpack.c.h.b16 %v106
    %v302 = vunpack.c.l.b16 %v107
    %v303 = vunpack.c.h.b16 %v107
    %v304 = vunpack.c.l.b16 %v108
    %v305 = vunpack.c.h.b16 %v108
    %v306 = vunpack.c.l.b16 %v109
    %v307 = vunpack.c.h.b16 %v109
    %v308 = vunpack.c.l.b16 %v110
    %v309 = vunpack.c.h.b16 %v110
    %v310 = vunpack.c.l.b16 %v111
    %v311 = vunpack.c.h.b16 %v111
    %v312 = vunpack.c.l.b16 %v112
    %v313 = vunpack.c.h.b16 %v112
    %v314 = vunpack.c.l.b16 %v113
    %v315 = vunpack.c.h.b16 %v113
    %v316 = vunpack.c.l.b16 %v114
    %v317 = vunpack.c.h.b16 %v114
    %v318 = vunpack.c.l.b16 %v115
    %v319 = vunpack.c.h.b16 %v115
    %v320 = vunpack.c.l.b16 %v116
    %v321 = vunpack.c.h.b16 %v116
    %v322 = vunpack.c.l.b16 %v117
    %v323 = vunpack.c.h.b16 %v117
    %v324 = vunpack.c.l.b16 %v118
    %v325 = vunpack.c.h.b16 %v118
    %v326 = vunpack.c.l.b16 %v119
    %v327 = vunpack.c.h.b16 %v119
    %v328 = vunpack.c.l.b16 %v120
    %v329 = vunpack.c.h.b16 %v120
    %v330 = vunpack.c.l.b16 %v121
    %v331 = vunpack.c.h.b16 %v121
    %v332 = vunpack.c.l.b16 %v122
    %v333 = vunpack.c.h.b16 %v122
    %v334 = vunpack.c.l.b16 %v123
    %v335 = vunpack.c.h.b16 %v123
    %v336 = vunpack.c.l.b16 %v124
    %v337 = vunpack.c.h.b16 %v124
    %v338 = vunpack.c.l.b16 %v125
    %v339 = vunpack.c.h.b16 %v125
    %v340 = vunpack.c.l.b16 %v126
    %v341 = vunpack.c.h.b16 %v126
    %v342 = vunpack.c.l.b16 %v127
    %v343 = vunpack.c.h.b16 %v127
    %v344 = vunpack.c.l.b16 %v128
    %v345 = vunpack.c.h.b16 %v128
    %v346 = vunpack.c.l.b16 %v129
    %v347 = vunpack.c.h.b16 %v129
    %v348 = vunpack.c.l.b16 %v130
    %v349 = vunpack.c.h.b16 %v130
    %v350 = vunpack.c.l.b16 %v131
    %v351 = vunpack.c.h.b16 %v131
    %v352 = vunpack.c.l.b16 %v132
    %v353 = vunpack.c.h.b16 %v132
    %v354 = vunpack.c.l.b16 %v133
    %v355 = vunpack.c.h.b16 %v133
    %v356 = vunpack.c.l.b16 %v134
    %v357 = vunpack.c.h.b16 %v134
    %v358 = vunpack.c.l.b16 %v135
    %v359 = vunpack.c.h.b16 %v135
    %v360 = vunpack.c.l.b16 %v136
    %v361 = vunpack.c.h.b16 %v136
    %v362 = vunpack.c.l.b16 %v137
    %v363 = vunpack.c.h.b16 %v137
    %v364 = vunpack.c.l.b16 %v138
    %v365 = vunpack.c.h.b16 %v138
    %v366 = vunpack.c.l.b16 %v139
    %v367 = vunpack.c.h.b16 %v139
    %v368 = vunpack.c.l.b16 %v140
    %v369 = vunpack.c.h.b16 %v140
    %v370 = vunpack.c.l.b16 %v141
    %v371 = vunpack.c.h.b16 %v141
    %v372 = vunpack.c.l.b16 %v142
    %v373 = vunpack.c.h.b16 %v142
    %v374 = vunpack.c.l.b16 %v143
    %v375 = vunpack.c.h.b16 %v143
    %v376 = vunpack.c.l.b16 %v144
    %v377 = vunpack.c.h.b16 %v144
    %v378 = vunpack.c.l.b16 %v145
    %v379 = vunpack.c.h.b16 %v145
    %v380 = vunpack.c.l.b16 %v146
    %v381 = vunpack.c.h.b16 %v146
    %v382 = vunpack.c.l.b16 %v147
    %v383 = vunpack.c.h.b16 %v147
    %v384 = vunpack.c.l.b16 %v148
    %v385 = vunpack.c.h.b16 %v148
    %v386 = vunpack.c.l.b16 %v149
    %v387 = vunpack.c.h.b16 %v149
    %v388 = vunpack.c.l.b16 %v150
    %v389 = vunpack.c.h.b16 %v150
    %v390 = vunpack.c.l.b16 %v151
    %v391 = vunpack.c.h.b16 %v151
    %v392 = vunpack.c.l.b16 %v152
    %v393 = vunpack.c.h.b16 %v152
    %v394 = vunpack.c.l.b16 %v153
    %v395 = vunpack.c.h.b16 %v153
    %v396 = vunpack.c.l.b16 %v154
    %v397 = vunpack.c.h.b16 %v154
    %v398 = vunpack.c.l.b16 %v155
    %v399 = vunpack.c.h.b16 %v155
    %v400 = vunpack.c.l.b16 %v156
    %v401 = vunpack.c.h.b16 %v156
    %v402 = vunpack.c.l.b16 %v157
    %v403 = vunpack.c.h.b16 %v157
    %v404 = vunpack.c.l.b16 %v158
    %v405 = vunpack.c.h.b16 %v158
    %v406 = vunpack.c.l.b16 %v159
    %v407 = vunpack.c.h.b16 %v159
    %v408 = vunpack.c.l.b16 %v160
    %v409 = vunpack.c.h.b16 %v160
    %v410 = vunpack.c.l.b16 %v161
    %v411 = vunpack.c.h.b16 %v161
    %v412 = vunpack.c.l.b16 %v162
    %v413 = vunpack.c.h.b16 %v162
    %v414 = vunpack.c.l.b16 %v163
    %v415 = vunpack.c.h.b16 %v163
    %v416 = vunpack.c.l.b16 %v164
    %v417 = vunpack.c.h.b16 %v164
    %v418 = vunpack.c.l.b16 %v165
    %v419 = vunpack.c.h.b16 %v165
    %v420 = vunpack.c.l.b16 %v166
    %v421 = vunpack.c.h.b16 %v166
    %v422 = vunpack.c.l.b16 %v167
    %v423 = vunpack.c.h.b16 %v167
    %v424 = vunpack.c.l.b16 %v168
    %v425 = vunpack.c.h.b16 %v168
    %v426 = vpack.c.b16 %v298, %v290
    %v427 = vpack.c.b16 %v299, %v291
    %v428 = vpack.c.b16 %v300, %v292
    %v429 = vpack.c.b16 %v301, %v293
    %v430 = vpack.c.b16 %v302, %v294
    %v431 = vpack.c.b16 %v303, %v295
    %v432 = vpack.c.b16 %v304, %v296
    %v433 = vpack.c.b16 %v305, %v297
    %v434 = vpack.c.b16 %v314, %v306
    %v435 = vpack.c.b16 %v315, %v307
    %v436 = vpack.c.b16 %v316, %v308
    %v437 = vpack.c.b16 %v317, %v309
    %v438 = vpack.c.b16 %v318, %v310
    %v439 = vpack.c.b16 %v319, %v311
    %v440 = vpack.c.b16 %v320, %v312
    %v441 = vpack.c.b16 %v321, %v313
    %v442 = vpack.c.b16 %v330, %v322
    %v443 = vpack.c.b16 %v331, %v323
    %v444 = vpack.c.b16 %v332, %v324
    %v445 = vpack.c.b16 %v333, %v325
    %v446 = vpack.c.b16 %v334, %v326
    %v447 = vpack.c.b16 %v335, %v327
    %v448 = vpack.c.b16 %v336, %v328
    %v449 = vpack.c.b16 %v337, %v329
    %v450 = vpack.c.b16 %v346, %v338
    %v451 = vpack.c.b16 %v347, %v339
    %v452 = vpack.c.b16 %v348, %v340
    %v453 = vpack.c.b16 %v349, %v341
    %v454 = vpack.c.b16 %v350, %v342
    %v455 = vpack.c.b16 %v351, %v343
    %v456 = vpack.c.b16 %v352, %v344
    %v457 = vpack.c.b16 %v353, %v345
    %v458 = vpack.c.b16 %v362, %v354
    %v459 = vpack.c.b16 %v363, %v355
    %v460 = vpack.c.b16 %v364, %v356
    %v461 = vpack.c.b16 %v365, %v357
    %v462 = vpack.c.b16 %v366, %v358
    %v463 = vpack.c.b16 %v367, %v359
    %v464 = vpack.c.b16 %v368, %v360
    %v465 = vpack.c.b16 %v369, %v361
    %v466 = vpack.c.b16 %v378, %v370
    %v467 = vpack.c.b16 %v379, %v371
    %v468 = vpack.c.b16 %v380, %v372
    %v469 = vpack.c.b16 %v381, %v373
    %v470 = vpack.c.b16 %v382, %v374
    %v471 = vpack.c.b16 %v383, %v375
    %v472 = vpack.c.b16 %v384, %v376
    %v473 = vpack.c.b16 %v385, %v377
    %v474 = vpack.c.b16 %v394, %v386
    %v475 = vpack.c.b16 %v395, %v387
    %v476 = vpack.c.b16 %v396, %v388
    %v477 = vpack.c.b16 %v397, %v389
    %v478 = vpack.c.b16 %v398, %v390
    %v479 = vpack.c.b16 %v399, %v391
    %v480 = vpack.c.b16 %v400, %v392
    %v481 = vpack.c.b16 %v401, %v393
    %v482 = vpack.c.b16 %v410, %v402
    %v483 = vpack.c.b16 %v411, %v403
    %v484 = vpack.c.b16 %v412, %v404
    %v485 = vpack.c.b16 %v413, %v405
    %v486 = vpack.c.b16 %v414, %v406
    %v487 = vpack.c.b16 %v415, %v407
    %v488 = vpack.c.b16 %v416, %v408
    %v489 = vpack.c.b16 %v417, %v409
    %v490 = vpack.c.b16 %v418, %v418
    %v491 = vpack.c.b16 %v419, %v419
    %v492 = vpack.c.b16 %v420, %v420
    %v493 = vpack.c.b16 %v421, %v421
    %v494 = vpack.c.b16 %v422, %v422
    %v495 = vpack.c.b16 %v423, %v423
    %v496 = vpack.c.b16 %v424, %v424
    %v497 = vpack.c.b16 %v425, %v425
    %vm562 = vcmask 64512
    %v564 = vsel %vm562, %v220, 0
    %vm566 = vcmask 1043456
    %v568 = vsel %vm566, %v490, 0
    %v571 = vsel %vm566, %v491, 0
    %v574 = vsel %vm566, %v492, 0
    %v577 = vsel %vm566, %v493, 0
    %v580 = vsel %vm566, %v494, 0
    %v583 = vsel %vm566, %v495, 0
    %v586 = vsel %vm566, %v496, 0
    %v589 = vsel %vm566, %v497, 0
    %591 = vmatprep.subr.bf16.mxu0 %v483
    %592 = vmatpush1.bf16.msra.mxu0 %v482
    %593 = vmatprep.subr.bf16.mxu0 %v475
    %594 = vmatpush1.bf16.msra.mxu0 %v474
    %595 = vmatprep.subr.bf16.mxu0 %v467
    %596 = vmatpush1.bf16.msra.mxu0 %v466
    %597 = vmatprep.subr.bf16.mxu0 %v459
    %598 = vmatpush1.bf16.msra.mxu0 %v458
    %599 = vmatprep.subr.bf16.mxu0 %v451
    %600 = vmatpush1.bf16.msra.mxu0 %v450
    %601 = vmatprep.subr.bf16.mxu0 %v443
    %602 = vmatpush1.bf16.msra.mxu0 %v442
    %603 = vmatprep.subr.bf16.mxu0 %v435
    %604 = vmatpush1.bf16.msra.mxu0 %v434
    %605 = vmatprep.subr.bf16.mxu0 %v427
    %606 = vmatpush1.bf16.msra.mxu0 %v426
    %607 = vmatprep.subr.bf16.mxu0 0
    %608 = vmatpush2.bf16.msra.mxu0 0
    %609 = vmatprep.subr.bf16.mxu0 0
    %610 = vmatpush2.bf16.msra.mxu0 0
    %611 = vmatprep.subr.bf16.mxu0 0
    %612 = vmatpush2.bf16.msra.mxu0 0
    %613 = vmatprep.subr.bf16.mxu0 0
    %614 = vmatpush2.bf16.msra.mxu0 0
    %615 = vmatprep.subr.bf16.mxu0 0
    %616 = vmatpush2.bf16.msra.mxu0 0
    %617 = vmatprep.subr.bf16.mxu0 0
    %618 = vmatpush2.bf16.msra.mxu0 0
    %619 = vmatprep.subr.bf16.mxu0 0
    %620 = vmatpush2.bf16.msra.mxu0 0
    %621 = vmatprep.subr.bf16.mxu0 %v571
    %622 = vmatpush2.bf16.msra.mxu0 %v568
    %623 = vmatprep.mubr.bf16.mxu0 %v564
    %624 = vmatmul.mubr.bf16.gmra.mxu0 %v219
    %v625 = vpop.f32.mrf.mxu0
    %v626 = vadd.f32 %v176, %v625
    %v627 = vpop.f32.mrf.mxu0
    %v628 = vadd.f32 %v180, %v627
    %v629 = vpop.f32.mrf.mxu0
    %v630 = vadd.f32 %v176, %v629
    %v631 = vpop.f32.mrf.mxu0
    %v632 = vadd.f32 %v180, %v631
    %633 = vdwg.mxu0
    %634 = vmatprep.subr.bf16.mxu0 %v485
    %635 = vmatpush1.bf16.msra.mxu0 %v484
    %636 = vmatprep.subr.bf16.mxu0 %v477
    %637 = vmatpush1.bf16.msra.mxu0 %v476
    %638 = vmatprep.subr.bf16.mxu0 %v469
    %639 = vmatpush1.bf16.msra.mxu0 %v468
    %640 = vmatprep.subr.bf16.mxu0 %v461
    %641 = vmatpush1.bf16.msra.mxu0 %v460
    %642 = vmatprep.subr.bf16.mxu0 %v453
    %643 = vmatpush1.bf16.msra.mxu0 %v452
    %644 = vmatprep.subr.bf16.mxu0 %v445
    %645 = vmatpush1.bf16.msra.mxu0 %v444
    %646 = vmatprep.subr.bf16.mxu0 %v437
    %647 = vmatpush1.bf16.msra.mxu0 %v436
    %648 = vmatprep.subr.bf16.mxu0 %v429
    %649 = vmatpush1.bf16.msra.mxu0 %v428
    %650 = vmatprep.subr.bf16.mxu0 0
    %651 = vmatpush2.bf16.msra.mxu0 0
    %652 = vmatprep.subr.bf16.mxu0 0
    %653 = vmatpush2.bf16.msra.mxu0 0
    %654 = vmatprep.subr.bf16.mxu0 0
    %655 = vmatpush2.bf16.msra.mxu0 0
    %656 = vmatprep.subr.bf16.mxu0 0
    %657 = vmatpush2.bf16.msra.mxu0 0
    %658 = vmatprep.subr.bf16.mxu0 0
    %659 = vmatpush2.bf16.msra.mxu0 0
    %660 = vmatprep.subr.bf16.mxu0 0
    %661 = vmatpush2.bf16.msra.mxu0 0
    %662 = vmatprep.subr.bf16.mxu0 0
    %663 = vmatpush2.bf16.msra.mxu0 0
    %664 = vmatprep.subr.bf16.mxu0 %v577
    %665 = vmatpush2.bf16.msra.mxu0 %v574
    %666 = vmatprep.mubr.bf16.mxu0 %v564
    %667 = vmatmul.mubr.bf16.gmra.mxu0 %v219
    %v668 = vpop.f32.mrf.mxu0
    %v669 = vadd.f32 %v184, %v668
    %v670 = vpop.f32.mrf.mxu0
    %v671 = vadd.f32 %v188, %v670
    %v672 = vpop.f32.mrf.mxu0
    %v673 = vadd.f32 %v184, %v672
    %v674 = vpop.f32.mrf.mxu0
    %v675 = vadd.f32 %v188, %v674
    %676 = vdwg.mxu0
    %677 = vmatprep.subr.bf16.mxu0 %v487
    %678 = vmatpush1.bf16.msra.mxu0 %v486
    %679 = vmatprep.subr.bf16.mxu0 %v479
    %680 = vmatpush1.bf16.msra.mxu0 %v478
    %681 = vmatprep.subr.bf16.mxu0 %v471
    %682 = vmatpush1.bf16.msra.mxu0 %v470
    %683 = vmatprep.subr.bf16.mxu0 %v463
    %684 = vmatpush1.bf16.msra.mxu0 %v462
    %685 = vmatprep.subr.bf16.mxu0 %v455
    %686 = vmatpush1.bf16.msra.mxu0 %v454
    %687 = vmatprep.subr.bf16.mxu0 %v447
    %688 = vmatpush1.bf16.msra.mxu0 %v446
    %689 = vmatprep.subr.bf16.mxu0 %v439
    %690 = vmatpush1.bf16.msra.mxu0 %v438
    %691 = vmatprep.subr.bf16.mxu0 %v431
    %692 = vmatpush1.bf16.msra.mxu0 %v430
    %693 = vmatprep.subr.bf16.mxu0 0
    %694 = vmatpush2.bf16.msra.mxu0 0
    %695 = vmatprep.subr.bf16.mxu0 0
    %696 = vmatpush2.bf16.msra.mxu0 0
    %697 = vmatprep.subr.bf16.mxu0 0
    %698 = vmatpush2.bf16.msra.mxu0 0
    %699 = vmatprep.subr.bf16.mxu0 0
    %700 = vmatpush2.bf16.msra.mxu0 0
    %701 = vmatprep.subr.bf16.mxu0 0
    %702 = vmatpush2.bf16.msra.mxu0 0
    %703 = vmatprep.subr.bf16.mxu0 0
    %704 = vmatpush2.bf16.msra.mxu0 0
    %705 = vmatprep.subr.bf16.mxu0 0
    %706 = vmatpush2.bf16.msra.mxu0 0
    %707 = vmatprep.subr.bf16.mxu0 %v583
    %708 = vmatpush2.bf16.msra.mxu0 %v580
    %709 = vmatprep.mubr.bf16.mxu0 %v564
    %710 = vmatmul.mubr.bf16.gmra.mxu0 %v219
    %v711 = vpop.f32.mrf.mxu0
    %v712 = vadd.f32 %v192, %v711
    %v713 = vpop.f32.mrf.mxu0
    %v714 = vadd.f32 %v196, %v713
    %v715 = vpop.f32.mrf.mxu0
    %v716 = vadd.f32 %v192, %v715
    %v717 = vpop.f32.mrf.mxu0
    %v718 = vadd.f32 %v196, %v717
    %719 = vdwg.mxu0
    %720 = vmatprep.subr.bf16.mxu0 %v489
    %721 = vmatpush1.bf16.msra.mxu0 %v488
    %722 = vmatprep.subr.bf16.mxu0 %v481
    %723 = vmatpush1.bf16.msra.mxu0 %v480
    %724 = vmatprep.subr.bf16.mxu0 %v473
    %725 = vmatpush1.bf16.msra.mxu0 %v472
    %726 = vmatprep.subr.bf16.mxu0 %v465
    %727 = vmatpush1.bf16.msra.mxu0 %v464
    %728 = vmatprep.subr.bf16.mxu0 %v457
    %729 = vmatpush1.bf16.msra.mxu0 %v456
    %730 = vmatprep.subr.bf16.mxu0 %v449
    %731 = vmatpush1.bf16.msra.mxu0 %v448
    %732 = vmatprep.subr.bf16.mxu0 %v441
    %733 = vmatpush1.bf16.msra.mxu0 %v440
    %734 = vmatprep.subr.bf16.mxu0 %v433
    %735 = vmatpush1.bf16.msra.mxu0 %v432
    %736 = vmatprep.subr.bf16.mxu0 0
    %737 = vmatpush2.bf16.msra.mxu0 0
    %738 = vmatprep.subr.bf16.mxu0 0
    %739 = vmatpush2.bf16.msra.mxu0 0
    %740 = vmatprep.subr.bf16.mxu0 0
    %741 = vmatpush2.bf16.msra.mxu0 0
    %742 = vmatprep.subr.bf16.mxu0 0
    %743 = vmatpush2.bf16.msra.mxu0 0
    %744 = vmatprep.subr.bf16.mxu0 0
    %745 = vmatpush2.bf16.msra.mxu0 0
    %746 = vmatprep.subr.bf16.mxu0 0
    %747 = vmatpush2.bf16.msra.mxu0 0
    %748 = vmatprep.subr.bf16.mxu0 0
    %749 = vmatpush2.bf16.msra.mxu0 0
    %750 = vmatprep.subr.bf16.mxu0 %v589
    %751 = vmatpush2.bf16.msra.mxu0 %v586
    %752 = vmatprep.mubr.bf16.mxu0 %v564
    %753 = vmatmul.mubr.bf16.gmra.mxu0 %v219
    %v754 = vpop.f32.mrf.mxu0
    %v755 = vadd.f32 %v200, %v754
    %v756 = vpop.f32.mrf.mxu0
    %v757 = vadd.f32 %v204, %v756
    %v758 = vpop.f32.mrf.mxu0
    %v759 = vadd.f32 %v200, %v758
    %v760 = vpop.f32.mrf.mxu0
    %v761 = vadd.f32 %v204, %v760
    %762 = vdwg.mxu0
    %v763 = vmax.f32 %v626, 0.0
    %v764 = vmax.f32 %v628, 0.0
    %v765 = vmax.f32 %v669, 0.0
    %v766 = vmax.f32 %v671, 0.0
    %v767 = vmax.f32 %v712, 0.0
    %v768 = vmax.f32 %v714, 0.0
    %v769 = vmax.f32 %v755, 0.0
    %v770 = vmax.f32 %v757, 0.0
    %v771 = vmax.f32 %v630, 0.0
    %v772 = vmax.f32 %v632, 0.0
    %v773 = vmax.f32 %v673, 0.0
    %v774 = vmax.f32 %v675, 0.0
    %v775 = vmax.f32 %v716, 0.0
    %v776 = vmax.f32 %v718, 0.0
    %v777 = vmax.f32 %v759, 0.0
    %v778 = vmax.f32 %v761, 0.0
    %v779 = vpack.c.bf16 %v771, %v763
    %v780 = vpack.c.bf16 %v772, %v764
    %v781 = vpack.c.bf16 %v773, %v765
    %v782 = vpack.c.bf16 %v774, %v766
    %v783 = vpack.c.bf16 %v775, %v767
    %v784 = vpack.c.bf16 %v776, %v768
    %v785 = vpack.c.bf16 %v777, %v769
    %v786 = vpack.c.bf16 %v778, %v770
    %v787 = vld [vmem:[#allocation7] sm:$0xff]
    %v788 = vld [vmem:[#allocation7 + $0x8] sm:$0xff]
    %v789 = vld [vmem:[#allocation7 + $0x10] sm:$0xff]
    %v790 = vld [vmem:[#allocation7 + $0x18] sm:$0xff]
    %v791 = vld [vmem:[#allocation7 + $0x20] sm:$0xff]
    %v792 = vld [vmem:[#allocation7 + $0x28] sm:$0xff]
    %v793 = vld [vmem:[#allocation7 + $0x30] sm:$0xff]
    %v794 = vld [vmem:[#allocation7 + $0x38] sm:$0xff]
    %v795 = vld [vmem:[#allocation7 + $0x40] sm:$0xff]
    %v796 = vld [vmem:[#allocation7 + $0x48] sm:$0xff]
    %v797 = vld [vmem:[#allocation7 + $0x50] sm:$0xff]
    %v798 = vld [vmem:[#allocation7 + $0x58] sm:$0xff]
    %v799 = vld [vmem:[#allocation7 + $0x60] sm:$0xff]
    %v800 = vld [vmem:[#allocation7 + $0x68] sm:$0xff]
    %v801 = vld [vmem:[#allocation7 + $0x70] sm:$0xff]
    %v802 = vld [vmem:[#allocation7 + $0x78] sm:$0xff]
    %v803 = vld [vmem:[#allocation7 + $0x80] sm:$0xff]
    %v804 = vld [vmem:[#allocation7 + $0x88] sm:$0xff]
    %v805 = vld [vmem:[#allocation7 + $0x90] sm:$0xff]
    %v806 = vld [vmem:[#allocation7 + $0x98] sm:$0xff]
    %v807 = vld [vmem:[#allocation7 + $0xa0] sm:$0xff]
    %v808 = vld [vmem:[#allocation7 + $0xa8] sm:$0xff]
    %v809 = vld [vmem:[#allocation7 + $0xb0] sm:$0xff]
    %v810 = vld [vmem:[#allocation7 + $0xb8] sm:$0xff]
    %v811 = vld [vmem:[#allocation7 + $0xc0] sm:$0xff]
    %v812 = vld [vmem:[#allocation7 + $0xc8] sm:$0xff]
    %v813 = vld [vmem:[#allocation7 + $0xd0] sm:$0xff]
    %v814 = vld [vmem:[#allocation7 + $0xd8] sm:$0xff]
    %v815 = vld [vmem:[#allocation7 + $0xe0] sm:$0xff]
    %v816 = vld [vmem:[#allocation7 + $0xe8] sm:$0xff]
    %v817 = vld [vmem:[#allocation7 + $0xf0] sm:$0xff]
    %v818 = vld [vmem:[#allocation7 + $0xf8] sm:$0xff]
    %v819 = vld [vmem:[#allocation7 + $0x100] sm:$0xff]
    %v820 = vld [vmem:[#allocation7 + $0x108] sm:$0xff]
    %v821 = vld [vmem:[#allocation7 + $0x110] sm:$0xff]
    %v822 = vld [vmem:[#allocation7 + $0x118] sm:$0xff]
    %v823 = vld [vmem:[#allocation7 + $0x120] sm:$0xff]
    %v824 = vld [vmem:[#allocation7 + $0x128] sm:$0xff]
    %v825 = vld [vmem:[#allocation7 + $0x130] sm:$0xff]
    %v826 = vld [vmem:[#allocation7 + $0x138] sm:$0xff]
    %v827 = vld [vmem:[#allocation7 + $0x140] sm:$0xff]
    %v828 = vld [vmem:[#allocation7 + $0x148] sm:$0xff]
    %v829 = vld [vmem:[#allocation7 + $0x150] sm:$0xff]
    %v830 = vld [vmem:[#allocation7 + $0x158] sm:$0xff]
    %v831 = vld [vmem:[#allocation7 + $0x160] sm:$0xff]
    %v832 = vld [vmem:[#allocation7 + $0x168] sm:$0xff]
    %v833 = vld [vmem:[#allocation7 + $0x170] sm:$0xff]
    %v834 = vld [vmem:[#allocation7 + $0x178] sm:$0xff]
    %v835 = vld [vmem:[#allocation7 + $0x180] sm:$0xff]
    %v836 = vld [vmem:[#allocation7 + $0x188] sm:$0xff]
    %v837 = vld [vmem:[#allocation7 + $0x190] sm:$0xff]
    %v838 = vld [vmem:[#allocation7 + $0x198] sm:$0xff]
    %v839 = vld [vmem:[#allocation7 + $0x1a0] sm:$0xff]
    %v840 = vld [vmem:[#allocation7 + $0x1a8] sm:$0xff]
    %v841 = vld [vmem:[#allocation7 + $0x1b0] sm:$0xff]
    %v842 = vld [vmem:[#allocation7 + $0x1b8] sm:$0xff]
    %v843 = vld [vmem:[#allocation7 + $0x1c0] sm:$0xff]
    %v844 = vld [vmem:[#allocation7 + $0x1c8] sm:$0xff]
    %v845 = vld [vmem:[#allocation7 + $0x1d0] sm:$0xff]
    %v846 = vld [vmem:[#allocation7 + $0x1d8] sm:$0xff]
    %v847 = vld [vmem:[#allocation7 + $0x1e0] sm:$0xff]
    %v848 = vld [vmem:[#allocation7 + $0x1e8] sm:$0xff]
    %v849 = vld [vmem:[#allocation7 + $0x1f0] sm:$0xff]
    %v850 = vld [vmem:[#allocation7 + $0x1f8] sm:$0xff]
    %v851 = vld [vmem:[#allocation7 + $0x200] sm:$0xff]
    %v852 = vld [vmem:[#allocation7 + $0x208] sm:$0xff]
    %v853 = vld [vmem:[#allocation7 + $0x210] sm:$0xff]
    %v854 = vld [vmem:[#allocation7 + $0x218] sm:$0xff]
    %v855 = vld [vmem:[#allocation7 + $0x220] sm:$0xff]
    %v856 = vld [vmem:[#allocation7 + $0x228] sm:$0xff]
    %v857 = vld [vmem:[#allocation7 + $0x230] sm:$0xff]
    %v858 = vld [vmem:[#allocation7 + $0x238] sm:$0xff]
    %v859 = vld [vmem:[#allocation7 + $0x240] sm:$0xff]
    %v860 = vld [vmem:[#allocation7 + $0x248] sm:$0xff]
    %v861 = vld [vmem:[#allocation7 + $0x250] sm:$0xff]
    %v862 = vld [vmem:[#allocation7 + $0x258] sm:$0xff]
    %v863 = vld [vmem:[#allocation7 + $0x260] sm:$0xff]
    %v864 = vld [vmem:[#allocation7 + $0x268] sm:$0xff]
    %v865 = vld [vmem:[#allocation7 + $0x270] sm:$0xff]
    %v866 = vld [vmem:[#allocation7 + $0x278] sm:$0xff]
    %v867 = vld [vmem:[#allocation7 + $0x280] sm:$0xff]
    %v868 = vld [vmem:[#allocation7 + $0x288] sm:$0xff]
    %v869 = vld [vmem:[#allocation7 + $0x290] sm:$0xff]
    %v870 = vld [vmem:[#allocation7 + $0x298] sm:$0xff]
    %v871 = vld [vmem:[#allocation7 + $0x2a0] sm:$0xff]
    %v872 = vld [vmem:[#allocation7 + $0x2a8] sm:$0xff]
    %v873 = vld [vmem:[#allocation7 + $0x2b0] sm:$0xff]
    %v874 = vld [vmem:[#allocation7 + $0x2b8] sm:$0xff]
    %v875 = vld [vmem:[#allocation7 + $0x2c0] sm:$0xff]
    %v876 = vld [vmem:[#allocation7 + $0x2c8] sm:$0xff]
    %v877 = vld [vmem:[#allocation7 + $0x2d0] sm:$0xff]
    %v878 = vld [vmem:[#allocation7 + $0x2d8] sm:$0xff]
    %v879 = vld [vmem:[#allocation7 + $0x2e0] sm:$0xff]
    %v880 = vld [vmem:[#allocation7 + $0x2e8] sm:$0xff]
    %v881 = vld [vmem:[#allocation7 + $0x2f0] sm:$0xff]
    %v882 = vld [vmem:[#allocation7 + $0x2f8] sm:$0xff]
    %v883 = vld [vmem:[#allocation7 + $0x300] sm:$0xff]
    %v884 = vld [vmem:[#allocation7 + $0x308] sm:$0xff]
    %v885 = vld [vmem:[#allocation7 + $0x310] sm:$0xff]
    %v886 = vld [vmem:[#allocation7 + $0x318] sm:$0xff]
    %v887 = vld [vmem:[#allocation7 + $0x320] sm:$0xff]
    %v888 = vld [vmem:[#allocation7 + $0x328] sm:$0xff]
    %v889 = vld [vmem:[#allocation7 + $0x330] sm:$0xff]
    %v890 = vld [vmem:[#allocation7 + $0x338] sm:$0xff]
    %v891 = vld [vmem:[#allocation7 + $0x340] sm:$0xff]
    %v892 = vld [vmem:[#allocation7 + $0x348] sm:$0xff]
    %v893 = vld [vmem:[#allocation7 + $0x350] sm:$0xff]
    %v894 = vld [vmem:[#allocation7 + $0x358] sm:$0xff]
    %v895 = vld [vmem:[#allocation7 + $0x360] sm:$0xff]
    %v896 = vld [vmem:[#allocation7 + $0x368] sm:$0xff]
    %v897 = vld [vmem:[#allocation7 + $0x370] sm:$0xff]
    %v898 = vld [vmem:[#allocation7 + $0x378] sm:$0xff]
    %v899 = vld [vmem:[#allocation7 + $0x380] sm:$0xff]
    %v900 = vld [vmem:[#allocation7 + $0x388] sm:$0xff]
    %v901 = vld [vmem:[#allocation7 + $0x390] sm:$0xff]
    %v902 = vld [vmem:[#allocation7 + $0x398] sm:$0xff]
    %v903 = vld [vmem:[#allocation7 + $0x3a0] sm:$0xff]
    %v904 = vld [vmem:[#allocation7 + $0x3a8] sm:$0xff]
    %v905 = vld [vmem:[#allocation7 + $0x3b0] sm:$0xff]
    %v906 = vld [vmem:[#allocation7 + $0x3b8] sm:$0xff]
    %v907 = vld [vmem:[#allocation7 + $0x3c0] sm:$0xff]
    %v908 = vld [vmem:[#allocation7 + $0x3c8] sm:$0xff]
    %v909 = vld [vmem:[#allocation7 + $0x3d0] sm:$0xff]
    %v910 = vld [vmem:[#allocation7 + $0x3d8] sm:$0xff]
    %v911 = vld [vmem:[#allocation7 + $0x3e0] sm:$0xff]
    %v912 = vld [vmem:[#allocation7 + $0x3e8] sm:$0xff]
    %v913 = vld [vmem:[#allocation7 + $0x3f0] sm:$0xff]
    %v914 = vld [vmem:[#allocation7 + $0x3f8] sm:$0xff]
    %v915 = vld [vmem:[#allocation7 + $0x400] sm:$0xff]
    %v916 = vld [vmem:[#allocation7 + $0x408] sm:$0xff]
    %v917 = vld [vmem:[#allocation7 + $0x410] sm:$0xff]
    %v918 = vld [vmem:[#allocation7 + $0x418] sm:$0xff]
    %v919 = vld [vmem:[#allocation7 + $0x420] sm:$0xff]
    %v920 = vld [vmem:[#allocation7 + $0x428] sm:$0xff]
    %v921 = vld [vmem:[#allocation7 + $0x430] sm:$0xff]
    %v922 = vld [vmem:[#allocation7 + $0x438] sm:$0xff]
    %v923 = vld [vmem:[#allocation7 + $0x440] sm:$0xff]
    %v924 = vld [vmem:[#allocation7 + $0x448] sm:$0xff]
    %v925 = vld [vmem:[#allocation7 + $0x450] sm:$0xff]
    %v926 = vld [vmem:[#allocation7 + $0x458] sm:$0xff]
    %v927 = vld [vmem:[#allocation7 + $0x460] sm:$0xff]
    %v928 = vld [vmem:[#allocation7 + $0x468] sm:$0xff]
    %v929 = vld [vmem:[#allocation7 + $0x470] sm:$0xff]
    %v930 = vld [vmem:[#allocation7 + $0x478] sm:$0xff]
    %v931 = vld [vmem:[#allocation7 + $0x480] sm:$0xff]
    %v932 = vld [vmem:[#allocation7 + $0x488] sm:$0xff]
    %v933 = vld [vmem:[#allocation7 + $0x490] sm:$0xff]
    %v934 = vld [vmem:[#allocation7 + $0x498] sm:$0xff]
    %v935 = vld [vmem:[#allocation7 + $0x4a0] sm:$0xff]
    %v936 = vld [vmem:[#allocation7 + $0x4a8] sm:$0xff]
    %v937 = vld [vmem:[#allocation7 + $0x4b0] sm:$0xff]
    %v938 = vld [vmem:[#allocation7 + $0x4b8] sm:$0xff]
    %v939 = vld [vmem:[#allocation7 + $0x4c0] sm:$0xff]
    %v940 = vld [vmem:[#allocation7 + $0x4c8] sm:$0xff]
    %v941 = vld [vmem:[#allocation7 + $0x4d0] sm:$0xff]
    %v942 = vld [vmem:[#allocation7 + $0x4d8] sm:$0xff]
    %v943 = vld [vmem:[#allocation7 + $0x4e0] sm:$0xff]
    %v944 = vld [vmem:[#allocation7 + $0x4e8] sm:$0xff]
    %v945 = vld [vmem:[#allocation7 + $0x4f0] sm:$0xff]
    %v946 = vld [vmem:[#allocation7 + $0x4f8] sm:$0xff]
    %v947 = vld [vmem:[#allocation7 + $0x500] sm:$0xff]
    %v948 = vld [vmem:[#allocation7 + $0x508] sm:$0xff]
    %v949 = vld [vmem:[#allocation7 + $0x510] sm:$0xff]
    %v950 = vld [vmem:[#allocation7 + $0x518] sm:$0xff]
    %v951 = vld [vmem:[#allocation7 + $0x520] sm:$0xff]
    %v952 = vld [vmem:[#allocation7 + $0x528] sm:$0xff]
    %v953 = vld [vmem:[#allocation7 + $0x530] sm:$0xff]
    %v954 = vld [vmem:[#allocation7 + $0x538] sm:$0xff]
    %v955 = vld [vmem:[#allocation7 + $0x540] sm:$0xff]
    %v956 = vld [vmem:[#allocation7 + $0x548] sm:$0xff]
    %v957 = vld [vmem:[#allocation7 + $0x550] sm:$0xff]
    %v958 = vld [vmem:[#allocation7 + $0x558] sm:$0xff]
    %v959 = vld [vmem:[#allocation7 + $0x560] sm:$0xff]
    %v960 = vld [vmem:[#allocation7 + $0x568] sm:$0xff]
    %v961 = vld [vmem:[#allocation7 + $0x570] sm:$0xff]
    %v962 = vld [vmem:[#allocation7 + $0x578] sm:$0xff]
    %v963 = vld [vmem:[#allocation7 + $0x580] sm:$0xff]
    %v964 = vld [vmem:[#allocation7 + $0x588] sm:$0xff]
    %v965 = vld [vmem:[#allocation7 + $0x590] sm:$0xff]
    %v966 = vld [vmem:[#allocation7 + $0x598] sm:$0xff]
    %v967 = vld [vmem:[#allocation7 + $0x5a0] sm:$0xff]
    %v968 = vld [vmem:[#allocation7 + $0x5a8] sm:$0xff]
    %v969 = vld [vmem:[#allocation7 + $0x5b0] sm:$0xff]
    %v970 = vld [vmem:[#allocation7 + $0x5b8] sm:$0xff]
    %v971 = vld [vmem:[#allocation7 + $0x5c0] sm:$0xff]
    %v972 = vld [vmem:[#allocation7 + $0x5c8] sm:$0xff]
    %v973 = vld [vmem:[#allocation7 + $0x5d0] sm:$0xff]
    %v974 = vld [vmem:[#allocation7 + $0x5d8] sm:$0xff]
    %v975 = vld [vmem:[#allocation7 + $0x5e0] sm:$0xff]
    %v976 = vld [vmem:[#allocation7 + $0x5e8] sm:$0xff]
    %v977 = vld [vmem:[#allocation7 + $0x5f0] sm:$0xff]
    %v978 = vld [vmem:[#allocation7 + $0x5f8] sm:$0xff]
    %v979 = vld [vmem:[#allocation7 + $0x600] sm:$0xff]
    %v980 = vld [vmem:[#allocation7 + $0x608] sm:$0xff]
    %v981 = vld [vmem:[#allocation7 + $0x610] sm:$0xff]
    %v982 = vld [vmem:[#allocation7 + $0x618] sm:$0xff]
    %v983 = vld [vmem:[#allocation7 + $0x620] sm:$0xff]
    %v984 = vld [vmem:[#allocation7 + $0x628] sm:$0xff]
    %v985 = vld [vmem:[#allocation7 + $0x630] sm:$0xff]
    %v986 = vld [vmem:[#allocation7 + $0x638] sm:$0xff]
    %v987 = vld [vmem:[#allocation7 + $0x640] sm:$0xff]
    %v988 = vld [vmem:[#allocation7 + $0x648] sm:$0xff]
    %v989 = vld [vmem:[#allocation7 + $0x650] sm:$0xff]
    %v990 = vld [vmem:[#allocation7 + $0x658] sm:$0xff]
    %v991 = vld [vmem:[#allocation7 + $0x660] sm:$0xff]
    %v992 = vld [vmem:[#allocation7 + $0x668] sm:$0xff]
    %v993 = vld [vmem:[#allocation7 + $0x670] sm:$0xff]
    %v994 = vld [vmem:[#allocation7 + $0x678] sm:$0xff]
    %v995 = vld [vmem:[#allocation7 + $0x680] sm:$0xff]
    %v996 = vld [vmem:[#allocation7 + $0x688] sm:$0xff]
    %v997 = vld [vmem:[#allocation7 + $0x690] sm:$0xff]
    %v998 = vld [vmem:[#allocation7 + $0x698] sm:$0xff]
    %v999 = vld [vmem:[#allocation7 + $0x6a0] sm:$0xff]
    %v1000 = vld [vmem:[#allocation7 + $0x6a8] sm:$0xff]
    %v1001 = vld [vmem:[#allocation7 + $0x6b0] sm:$0xff]
    %v1002 = vld [vmem:[#allocation7 + $0x6b8] sm:$0xff]
    %v1003 = vld [vmem:[#allocation7 + $0x6c0] sm:$0xff]
    %v1004 = vld [vmem:[#allocation7 + $0x6c8] sm:$0xff]
    %v1005 = vld [vmem:[#allocation7 + $0x6d0] sm:$0xff]
    %v1006 = vld [vmem:[#allocation7 + $0x6d8] sm:$0xff]
    %v1007 = vld [vmem:[#allocation7 + $0x6e0] sm:$0xff]
    %v1008 = vld [vmem:[#allocation7 + $0x6e8] sm:$0xff]
    %v1009 = vld [vmem:[#allocation7 + $0x6f0] sm:$0xff]
    %v1010 = vld [vmem:[#allocation7 + $0x6f8] sm:$0xff]
    %v1011 = vld [vmem:[#allocation7 + $0x700] sm:$0xff]
    %v1012 = vld [vmem:[#allocation7 + $0x708] sm:$0xff]
    %v1013 = vld [vmem:[#allocation7 + $0x710] sm:$0xff]
    %v1014 = vld [vmem:[#allocation7 + $0x718] sm:$0xff]
    %v1015 = vld [vmem:[#allocation7 + $0x720] sm:$0xff]
    %v1016 = vld [vmem:[#allocation7 + $0x728] sm:$0xff]
    %v1017 = vld [vmem:[#allocation7 + $0x730] sm:$0xff]
    %v1018 = vld [vmem:[#allocation7 + $0x738] sm:$0xff]
    %v1019 = vld [vmem:[#allocation7 + $0x740] sm:$0xff]
    %v1020 = vld [vmem:[#allocation7 + $0x748] sm:$0xff]
    %v1021 = vld [vmem:[#allocation7 + $0x750] sm:$0xff]
    %v1022 = vld [vmem:[#allocation7 + $0x758] sm:$0xff]
    %v1023 = vld [vmem:[#allocation7 + $0x760] sm:$0xff]
    %v1024 = vld [vmem:[#allocation7 + $0x768] sm:$0xff]
    %v1025 = vld [vmem:[#allocation7 + $0x770] sm:$0xff]
    %v1026 = vld [vmem:[#allocation7 + $0x778] sm:$0xff]
    %v1027 = vld [vmem:[#allocation7 + $0x780] sm:$0xff]
    %v1028 = vld [vmem:[#allocation7 + $0x788] sm:$0xff]
    %v1029 = vld [vmem:[#allocation7 + $0x790] sm:$0xff]
    %v1030 = vld [vmem:[#allocation7 + $0x798] sm:$0xff]
    %v1031 = vld [vmem:[#allocation7 + $0x7a0] sm:$0xff]
    %v1032 = vld [vmem:[#allocation7 + $0x7a8] sm:$0xff]
    %v1033 = vld [vmem:[#allocation7 + $0x7b0] sm:$0xff]
    %v1034 = vld [vmem:[#allocation7 + $0x7b8] sm:$0xff]
    %v1035 = vld [vmem:[#allocation7 + $0x7c0] sm:$0xff]
    %v1036 = vld [vmem:[#allocation7 + $0x7c8] sm:$0xff]
    %v1037 = vld [vmem:[#allocation7 + $0x7d0] sm:$0xff]
    %v1038 = vld [vmem:[#allocation7 + $0x7d8] sm:$0xff]
    %v1039 = vld [vmem:[#allocation7 + $0x7e0] sm:$0xff]
    %v1040 = vld [vmem:[#allocation7 + $0x7e8] sm:$0xff]
    %v1041 = vld [vmem:[#allocation7 + $0x7f0] sm:$0xff]
    %v1042 = vld [vmem:[#allocation7 + $0x7f8] sm:$0xff]
    %s1043 = scalar_lea.vmem %s7, 1
    %v1044 = vld [vmem:[%s1043] ss:$8 sm:$0xf]
    %v1046 = vlaneseq
    %v1047 = vshrl.u32 %v1046, 7
    %v1048 = vsub.s32 0, %v1047
    %v1049 = vrot.slane %v1044, %v1048
    %v1050 = vlaneseq
    %v1051 = vshrl.u32 %v1050, 7
    %v1052 = vsub.s32 1, %v1051
    %v1053 = vrot.slane %v1044, %v1052
    %v1054 = vlaneseq
    %v1055 = vshrl.u32 %v1054, 7
    %v1056 = vsub.s32 2, %v1055
    %v1057 = vrot.slane %v1044, %v1056
    %v1058 = vlaneseq
    %v1059 = vshrl.u32 %v1058, 7
    %v1060 = vsub.s32 3, %v1059
    %v1061 = vrot.slane %v1044, %v1060
    %v1322 = vunpack.c.l.b16 %v787
    %v1323 = vunpack.c.h.b16 %v787
    %v1324 = vunpack.c.l.b16 %v788
    %v1325 = vunpack.c.h.b16 %v788
    %v1326 = vunpack.c.l.b16 %v789
    %v1327 = vunpack.c.h.b16 %v789
    %v1328 = vunpack.c.l.b16 %v790
    %v1329 = vunpack.c.h.b16 %v790
    %v1330 = vunpack.c.l.b16 %v791
    %v1331 = vunpack.c.h.b16 %v791
    %v1332 = vunpack.c.l.b16 %v792
    %v1333 = vunpack.c.h.b16 %v792
    %v1334 = vunpack.c.l.b16 %v793
    %v1335 = vunpack.c.h.b16 %v793
    %v1336 = vunpack.c.l.b16 %v794
    %v1337 = vunpack.c.h.b16 %v794
    %v1338 = vunpack.c.l.b16 %v795
    %v1339 = vunpack.c.h.b16 %v795
    %v1340 = vunpack.c.l.b16 %v796
    %v1341 = vunpack.c.h.b16 %v796
    %v1342 = vunpack.c.l.b16 %v797
    %v1343 = vunpack.c.h.b16 %v797
    %v1344 = vunpack.c.l.b16 %v798
    %v1345 = vunpack.c.h.b16 %v798
    %v1346 = vunpack.c.l.b16 %v799
    %v1347 = vunpack.c.h.b16 %v799
    %v1348 = vunpack.c.l.b16 %v800
    %v1349 = vunpack.c.h.b16 %v800
    %v1350 = vunpack.c.l.b16 %v801
    %v1351 = vunpack.c.h.b16 %v801
    %v1352 = vunpack.c.l.b16 %v802
    %v1353 = vunpack.c.h.b16 %v802
    %v1354 = vunpack.c.l.b16 %v803
    %v1355 = vunpack.c.h.b16 %v803
    %v1356 = vunpack.c.l.b16 %v804
    %v1357 = vunpack.c.h.b16 %v804
    %v1358 = vunpack.c.l.b16 %v805
    %v1359 = vunpack.c.h.b16 %v805
    %v1360 = vunpack.c.l.b16 %v806
    %v1361 = vunpack.c.h.b16 %v806
    %v1362 = vunpack.c.l.b16 %v807
    %v1363 = vunpack.c.h.b16 %v807
    %v1364 = vunpack.c.l.b16 %v808
    %v1365 = vunpack.c.h.b16 %v808
    %v1366 = vunpack.c.l.b16 %v809
    %v1367 = vunpack.c.h.b16 %v809
    %v1368 = vunpack.c.l.b16 %v810
    %v1369 = vunpack.c.h.b16 %v810
    %v1370 = vunpack.c.l.b16 %v811
    %v1371 = vunpack.c.h.b16 %v811
    %v1372 = vunpack.c.l.b16 %v812
    %v1373 = vunpack.c.h.b16 %v812
    %v1374 = vunpack.c.l.b16 %v813
    %v1375 = vunpack.c.h.b16 %v813
    %v1376 = vunpack.c.l.b16 %v814
    %v1377 = vunpack.c.h.b16 %v814
    %v1378 = vunpack.c.l.b16 %v815
    %v1379 = vunpack.c.h.b16 %v815
    %v1380 = vunpack.c.l.b16 %v816
    %v1381 = vunpack.c.h.b16 %v816
    %v1382 = vunpack.c.l.b16 %v817
    %v1383 = vunpack.c.h.b16 %v817
    %v1384 = vunpack.c.l.b16 %v818
    %v1385 = vunpack.c.h.b16 %v818
    %v1386 = vunpack.c.l.b16 %v819
    %v1387 = vunpack.c.h.b16 %v819
    %v1388 = vunpack.c.l.b16 %v820
    %v1389 = vunpack.c.h.b16 %v820
    %v1390 = vunpack.c.l.b16 %v821
    %v1391 = vunpack.c.h.b16 %v821
    %v1392 = vunpack.c.l.b16 %v822
    %v1393 = vunpack.c.h.b16 %v822
    %v1394 = vunpack.c.l.b16 %v823
    %v1395 = vunpack.c.h.b16 %v823
    %v1396 = vunpack.c.l.b16 %v824
    %v1397 = vunpack.c.h.b16 %v824
    %v1398 = vunpack.c.l.b16 %v825
    %v1399 = vunpack.c.h.b16 %v825
    %v1400 = vunpack.c.l.b16 %v826
    %v1401 = vunpack.c.h.b16 %v826
    %v1402 = vunpack.c.l.b16 %v827
    %v1403 = vunpack.c.h.b16 %v827
    %v1404 = vunpack.c.l.b16 %v828
    %v1405 = vunpack.c.h.b16 %v828
    %v1406 = vunpack.c.l.b16 %v829
    %v1407 = vunpack.c.h.b16 %v829
    %v1408 = vunpack.c.l.b16 %v830
    %v1409 = vunpack.c.h.b16 %v830
    %v1410 = vunpack.c.l.b16 %v831
    %v1411 = vunpack.c.h.b16 %v831
    %v1412 = vunpack.c.l.b16 %v832
    %v1413 = vunpack.c.h.b16 %v832
    %v1414 = vunpack.c.l.b16 %v833
    %v1415 = vunpack.c.h.b16 %v833
    %v1416 = vunpack.c.l.b16 %v834
    %v1417 = vunpack.c.h.b16 %v834
    %v1418 = vunpack.c.l.b16 %v835
    %v1419 = vunpack.c.h.b16 %v835
    %v1420 = vunpack.c.l.b16 %v836
    %v1421 = vunpack.c.h.b16 %v836
    %v1422 = vunpack.c.l.b16 %v837
    %v1423 = vunpack.c.h.b16 %v837
    %v1424 = vunpack.c.l.b16 %v838
    %v1425 = vunpack.c.h.b16 %v838
    %v1426 = vunpack.c.l.b16 %v839
    %v1427 = vunpack.c.h.b16 %v839
    %v1428 = vunpack.c.l.b16 %v840
    %v1429 = vunpack.c.h.b16 %v840
    %v1430 = vunpack.c.l.b16 %v841
    %v1431 = vunpack.c.h.b16 %v841
    %v1432 = vunpack.c.l.b16 %v842
    %v1433 = vunpack.c.h.b16 %v842
    %v1434 = vunpack.c.l.b16 %v843
    %v1435 = vunpack.c.h.b16 %v843
    %v1436 = vunpack.c.l.b16 %v844
    %v1437 = vunpack.c.h.b16 %v844
    %v1438 = vunpack.c.l.b16 %v845
    %v1439 = vunpack.c.h.b16 %v845
    %v1440 = vunpack.c.l.b16 %v846
    %v1441 = vunpack.c.h.b16 %v846
    %v1442 = vunpack.c.l.b16 %v847
    %v1443 = vunpack.c.h.b16 %v847
    %v1444 = vunpack.c.l.b16 %v848
    %v1445 = vunpack.c.h.b16 %v848
    %v1446 = vunpack.c.l.b16 %v849
    %v1447 = vunpack.c.h.b16 %v849
    %v1448 = vunpack.c.l.b16 %v850
    %v1449 = vunpack.c.h.b16 %v850
    %v1450 = vunpack.c.l.b16 %v851
    %v1451 = vunpack.c.h.b16 %v851
    %v1452 = vunpack.c.l.b16 %v852
    %v1453 = vunpack.c.h.b16 %v852
    %v1454 = vunpack.c.l.b16 %v853
    %v1455 = vunpack.c.h.b16 %v853
    %v1456 = vunpack.c.l.b16 %v854
    %v1457 = vunpack.c.h.b16 %v854
    %v1458 = vunpack.c.l.b16 %v855
    %v1459 = vunpack.c.h.b16 %v855
    %v1460 = vunpack.c.l.b16 %v856
    %v1461 = vunpack.c.h.b16 %v856
    %v1462 = vunpack.c.l.b16 %v857
    %v1463 = vunpack.c.h.b16 %v857
    %v1464 = vunpack.c.l.b16 %v858
    %v1465 = vunpack.c.h.b16 %v858
    %v1466 = vunpack.c.l.b16 %v859
    %v1467 = vunpack.c.h.b16 %v859
    %v1468 = vunpack.c.l.b16 %v860
    %v1469 = vunpack.c.h.b16 %v860
    %v1470 = vunpack.c.l.b16 %v861
    %v1471 = vunpack.c.h.b16 %v861
    %v1472 = vunpack.c.l.b16 %v862
    %v1473 = vunpack.c.h.b16 %v862
    %v1474 = vunpack.c.l.b16 %v863
    %v1475 = vunpack.c.h.b16 %v863
    %v1476 = vunpack.c.l.b16 %v864
    %v1477 = vunpack.c.h.b16 %v864
    %v1478 = vunpack.c.l.b16 %v865
    %v1479 = vunpack.c.h.b16 %v865
    %v1480 = vunpack.c.l.b16 %v866
    %v1481 = vunpack.c.h.b16 %v866
    %v1482 = vunpack.c.l.b16 %v867
    %v1483 = vunpack.c.h.b16 %v867
    %v1484 = vunpack.c.l.b16 %v868
    %v1485 = vunpack.c.h.b16 %v868
    %v1486 = vunpack.c.l.b16 %v869
    %v1487 = vunpack.c.h.b16 %v869
    %v1488 = vunpack.c.l.b16 %v870
    %v1489 = vunpack.c.h.b16 %v870
    %v1490 = vunpack.c.l.b16 %v871
    %v1491 = vunpack.c.h.b16 %v871
    %v1492 = vunpack.c.l.b16 %v872
    %v1493 = vunpack.c.h.b16 %v872
    %v1494 = vunpack.c.l.b16 %v873
    %v1495 = vunpack.c.h.b16 %v873
    %v1496 = vunpack.c.l.b16 %v874
    %v1497 = vunpack.c.h.b16 %v874
    %v1498 = vunpack.c.l.b16 %v875
    %v1499 = vunpack.c.h.b16 %v875
    %v1500 = vunpack.c.l.b16 %v876
    %v1501 = vunpack.c.h.b16 %v876
    %v1502 = vunpack.c.l.b16 %v877
    %v1503 = vunpack.c.h.b16 %v877
    %v1504 = vunpack.c.l.b16 %v878
    %v1505 = vunpack.c.h.b16 %v878
    %v1506 = vunpack.c.l.b16 %v879
    %v1507 = vunpack.c.h.b16 %v879
    %v1508 = vunpack.c.l.b16 %v880
    %v1509 = vunpack.c.h.b16 %v880
    %v1510 = vunpack.c.l.b16 %v881
    %v1511 = vunpack.c.h.b16 %v881
    %v1512 = vunpack.c.l.b16 %v882
    %v1513 = vunpack.c.h.b16 %v882
    %v1514 = vunpack.c.l.b16 %v883
    %v1515 = vunpack.c.h.b16 %v883
    %v1516 = vunpack.c.l.b16 %v884
    %v1517 = vunpack.c.h.b16 %v884
    %v1518 = vunpack.c.l.b16 %v885
    %v1519 = vunpack.c.h.b16 %v885
    %v1520 = vunpack.c.l.b16 %v886
    %v1521 = vunpack.c.h.b16 %v886
    %v1522 = vunpack.c.l.b16 %v887
    %v1523 = vunpack.c.h.b16 %v887
    %v1524 = vunpack.c.l.b16 %v888
    %v1525 = vunpack.c.h.b16 %v888
    %v1526 = vunpack.c.l.b16 %v889
    %v1527 = vunpack.c.h.b16 %v889
    %v1528 = vunpack.c.l.b16 %v890
    %v1529 = vunpack.c.h.b16 %v890
    %v1530 = vunpack.c.l.b16 %v891
    %v1531 = vunpack.c.h.b16 %v891
    %v1532 = vunpack.c.l.b16 %v892
    %v1533 = vunpack.c.h.b16 %v892
    %v1534 = vunpack.c.l.b16 %v893
    %v1535 = vunpack.c.h.b16 %v893
    %v1536 = vunpack.c.l.b16 %v894
    %v1537 = vunpack.c.h.b16 %v894
    %v1538 = vunpack.c.l.b16 %v895
    %v1539 = vunpack.c.h.b16 %v895
    %v1540 = vunpack.c.l.b16 %v896
    %v1541 = vunpack.c.h.b16 %v896
    %v1542 = vunpack.c.l.b16 %v897
    %v1543 = vunpack.c.h.b16 %v897
    %v1544 = vunpack.c.l.b16 %v898
    %v1545 = vunpack.c.h.b16 %v898
    %v1546 = vunpack.c.l.b16 %v899
    %v1547 = vunpack.c.h.b16 %v899
    %v1548 = vunpack.c.l.b16 %v900
    %v1549 = vunpack.c.h.b16 %v900
    %v1550 = vunpack.c.l.b16 %v901
    %v1551 = vunpack.c.h.b16 %v901
    %v1552 = vunpack.c.l.b16 %v902
    %v1553 = vunpack.c.h.b16 %v902
    %v1554 = vunpack.c.l.b16 %v903
    %v1555 = vunpack.c.h.b16 %v903
    %v1556 = vunpack.c.l.b16 %v904
    %v1557 = vunpack.c.h.b16 %v904
    %v1558 = vunpack.c.l.b16 %v905
    %v1559 = vunpack.c.h.b16 %v905
    %v1560 = vunpack.c.l.b16 %v906
    %v1561 = vunpack.c.h.b16 %v906
    %v1562 = vunpack.c.l.b16 %v907
    %v1563 = vunpack.c.h.b16 %v907
    %v1564 = vunpack.c.l.b16 %v908
    %v1565 = vunpack.c.h.b16 %v908
    %v1566 = vunpack.c.l.b16 %v909
    %v1567 = vunpack.c.h.b16 %v909
    %v1568 = vunpack.c.l.b16 %v910
    %v1569 = vunpack.c.h.b16 %v910
    %v1570 = vunpack.c.l.b16 %v911
    %v1571 = vunpack.c.h.b16 %v911
    %v1572 = vunpack.c.l.b16 %v912
    %v1573 = vunpack.c.h.b16 %v912
    %v1574 = vunpack.c.l.b16 %v913
    %v1575 = vunpack.c.h.b16 %v913
    %v1576 = vunpack.c.l.b16 %v914
    %v1577 = vunpack.c.h.b16 %v914
    %v1578 = vunpack.c.l.b16 %v915
    %v1579 = vunpack.c.h.b16 %v915
    %v1580 = vunpack.c.l.b16 %v916
    %v1581 = vunpack.c.h.b16 %v916
    %v1582 = vunpack.c.l.b16 %v917
    %v1583 = vunpack.c.h.b16 %v917
    %v1584 = vunpack.c.l.b16 %v918
    %v1585 = vunpack.c.h.b16 %v918
    %v1586 = vunpack.c.l.b16 %v919
    %v1587 = vunpack.c.h.b16 %v919
    %v1588 = vunpack.c.l.b16 %v920
    %v1589 = vunpack.c.h.b16 %v920
    %v1590 = vunpack.c.l.b16 %v921
    %v1591 = vunpack.c.h.b16 %v921
    %v1592 = vunpack.c.l.b16 %v922
    %v1593 = vunpack.c.h.b16 %v922
    %v1594 = vunpack.c.l.b16 %v923
    %v1595 = vunpack.c.h.b16 %v923
    %v1596 = vunpack.c.l.b16 %v924
    %v1597 = vunpack.c.h.b16 %v924
    %v1598 = vunpack.c.l.b16 %v925
    %v1599 = vunpack.c.h.b16 %v925
    %v1600 = vunpack.c.l.b16 %v926
    %v1601 = vunpack.c.h.b16 %v926
    %v1602 = vunpack.c.l.b16 %v927
    %v1603 = vunpack.c.h.b16 %v927
    %v1604 = vunpack.c.l.b16 %v928
    %v1605 = vunpack.c.h.b16 %v928
    %v1606 = vunpack.c.l.b16 %v929
    %v1607 = vunpack.c.h.b16 %v929
    %v1608 = vunpack.c.l.b16 %v930
    %v1609 = vunpack.c.h.b16 %v930
    %v1610 = vunpack.c.l.b16 %v931
    %v1611 = vunpack.c.h.b16 %v931
    %v1612 = vunpack.c.l.b16 %v932
    %v1613 = vunpack.c.h.b16 %v932
    %v1614 = vunpack.c.l.b16 %v933
    %v1615 = vunpack.c.h.b16 %v933
    %v1616 = vunpack.c.l.b16 %v934
    %v1617 = vunpack.c.h.b16 %v934
    %v1618 = vunpack.c.l.b16 %v935
    %v1619 = vunpack.c.h.b16 %v935
    %v1620 = vunpack.c.l.b16 %v936
    %v1621 = vunpack.c.h.b16 %v936
    %v1622 = vunpack.c.l.b16 %v937
    %v1623 = vunpack.c.h.b16 %v937
    %v1624 = vunpack.c.l.b16 %v938
    %v1625 = vunpack.c.h.b16 %v938
    %v1626 = vunpack.c.l.b16 %v939
    %v1627 = vunpack.c.h.b16 %v939
    %v1628 = vunpack.c.l.b16 %v940
    %v1629 = vunpack.c.h.b16 %v940
    %v1630 = vunpack.c.l.b16 %v941
    %v1631 = vunpack.c.h.b16 %v941
    %v1632 = vunpack.c.l.b16 %v942
    %v1633 = vunpack.c.h.b16 %v942
    %v1634 = vunpack.c.l.b16 %v943
    %v1635 = vunpack.c.h.b16 %v943
    %v1636 = vunpack.c.l.b16 %v944
    %v1637 = vunpack.c.h.b16 %v944
    %v1638 = vunpack.c.l.b16 %v945
    %v1639 = vunpack.c.h.b16 %v945
    %v1640 = vunpack.c.l.b16 %v946
    %v1641 = vunpack.c.h.b16 %v946
    %v1642 = vunpack.c.l.b16 %v947
    %v1643 = vunpack.c.h.b16 %v947
    %v1644 = vunpack.c.l.b16 %v948
    %v1645 = vunpack.c.h.b16 %v948
    %v1646 = vunpack.c.l.b16 %v949
    %v1647 = vunpack.c.h.b16 %v949
    %v1648 = vunpack.c.l.b16 %v950
    %v1649 = vunpack.c.h.b16 %v950
    %v1650 = vunpack.c.l.b16 %v951
    %v1651 = vunpack.c.h.b16 %v951
    %v1652 = vunpack.c.l.b16 %v952
    %v1653 = vunpack.c.h.b16 %v952
    %v1654 = vunpack.c.l.b16 %v953
    %v1655 = vunpack.c.h.b16 %v953
    %v1656 = vunpack.c.l.b16 %v954
    %v1657 = vunpack.c.h.b16 %v954
    %v1658 = vunpack.c.l.b16 %v955
    %v1659 = vunpack.c.h.b16 %v955
    %v1660 = vunpack.c.l.b16 %v956
    %v1661 = vunpack.c.h.b16 %v956
    %v1662 = vunpack.c.l.b16 %v957
    %v1663 = vunpack.c.h.b16 %v957
    %v1664 = vunpack.c.l.b16 %v958
    %v1665 = vunpack.c.h.b16 %v958
    %v1666 = vunpack.c.l.b16 %v959
    %v1667 = vunpack.c.h.b16 %v959
    %v1668 = vunpack.c.l.b16 %v960
    %v1669 = vunpack.c.h.b16 %v960
    %v1670 = vunpack.c.l.b16 %v961
    %v1671 = vunpack.c.h.b16 %v961
    %v1672 = vunpack.c.l.b16 %v962
    %v1673 = vunpack.c.h.b16 %v962
    %v1674 = vunpack.c.l.b16 %v963
    %v1675 = vunpack.c.h.b16 %v963
    %v1676 = vunpack.c.l.b16 %v964
    %v1677 = vunpack.c.h.b16 %v964
    %v1678 = vunpack.c.l.b16 %v965
    %v1679 = vunpack.c.h.b16 %v965
    %v1680 = vunpack.c.l.b16 %v966
    %v1681 = vunpack.c.h.b16 %v966
    %v1682 = vunpack.c.l.b16 %v967
    %v1683 = vunpack.c.h.b16 %v967
    %v1684 = vunpack.c.l.b16 %v968
    %v1685 = vunpack.c.h.b16 %v968
    %v1686 = vunpack.c.l.b16 %v969
    %v1687 = vunpack.c.h.b16 %v969
    %v1688 = vunpack.c.l.b16 %v970
    %v1689 = vunpack.c.h.b16 %v970
    %v1690 = vunpack.c.l.b16 %v971
    %v1691 = vunpack.c.h.b16 %v971
    %v1692 = vunpack.c.l.b16 %v972
    %v1693 = vunpack.c.h.b16 %v972
    %v1694 = vunpack.c.l.b16 %v973
    %v1695 = vunpack.c.h.b16 %v973
    %v1696 = vunpack.c.l.b16 %v974
    %v1697 = vunpack.c.h.b16 %v974
    %v1698 = vunpack.c.l.b16 %v975
    %v1699 = vunpack.c.h.b16 %v975
    %v1700 = vunpack.c.l.b16 %v976
    %v1701 = vunpack.c.h.b16 %v976
    %v1702 = vunpack.c.l.b16 %v977
    %v1703 = vunpack.c.h.b16 %v977
    %v1704 = vunpack.c.l.b16 %v978
    %v1705 = vunpack.c.h.b16 %v978
    %v1706 = vunpack.c.l.b16 %v979
    %v1707 = vunpack.c.h.b16 %v979
    %v1708 = vunpack.c.l.b16 %v980
    %v1709 = vunpack.c.h.b16 %v980
    %v1710 = vunpack.c.l.b16 %v981
    %v1711 = vunpack.c.h.b16 %v981
    %v1712 = vunpack.c.l.b16 %v982
    %v1713 = vunpack.c.h.b16 %v982
    %v1714 = vunpack.c.l.b16 %v983
    %v1715 = vunpack.c.h.b16 %v983
    %v1716 = vunpack.c.l.b16 %v984
    %v1717 = vunpack.c.h.b16 %v984
    %v1718 = vunpack.c.l.b16 %v985
    %v1719 = vunpack.c.h.b16 %v985
    %v1720 = vunpack.c.l.b16 %v986
    %v1721 = vunpack.c.h.b16 %v986
    %v1722 = vunpack.c.l.b16 %v987
    %v1723 = vunpack.c.h.b16 %v987
    %v1724 = vunpack.c.l.b16 %v988
    %v1725 = vunpack.c.h.b16 %v988
    %v1726 = vunpack.c.l.b16 %v989
    %v1727 = vunpack.c.h.b16 %v989
    %v1728 = vunpack.c.l.b16 %v990
    %v1729 = vunpack.c.h.b16 %v990
    %v1730 = vunpack.c.l.b16 %v991
    %v1731 = vunpack.c.h.b16 %v991
    %v1732 = vunpack.c.l.b16 %v992
    %v1733 = vunpack.c.h.b16 %v992
    %v1734 = vunpack.c.l.b16 %v993
    %v1735 = vunpack.c.h.b16 %v993
    %v1736 = vunpack.c.l.b16 %v994
    %v1737 = vunpack.c.h.b16 %v994
    %v1738 = vunpack.c.l.b16 %v995
    %v1739 = vunpack.c.h.b16 %v995
    %v1740 = vunpack.c.l.b16 %v996
    %v1741 = vunpack.c.h.b16 %v996
    %v1742 = vunpack.c.l.b16 %v997
    %v1743 = vunpack.c.h.b16 %v997
    %v1744 = vunpack.c.l.b16 %v998
    %v1745 = vunpack.c.h.b16 %v998
    %v1746 = vunpack.c.l.b16 %v999
    %v1747 = vunpack.c.h.b16 %v999
    %v1748 = vunpack.c.l.b16 %v1000
    %v1749 = vunpack.c.h.b16 %v1000
    %v1750 = vunpack.c.l.b16 %v1001
    %v1751 = vunpack.c.h.b16 %v1001
    %v1752 = vunpack.c.l.b16 %v1002
    %v1753 = vunpack.c.h.b16 %v1002
    %v1754 = vunpack.c.l.b16 %v1003
    %v1755 = vunpack.c.h.b16 %v1003
    %v1756 = vunpack.c.l.b16 %v1004
    %v1757 = vunpack.c.h.b16 %v1004
    %v1758 = vunpack.c.l.b16 %v1005
    %v1759 = vunpack.c.h.b16 %v1005
    %v1760 = vunpack.c.l.b16 %v1006
    %v1761 = vunpack.c.h.b16 %v1006
    %v1762 = vunpack.c.l.b16 %v1007
    %v1763 = vunpack.c.h.b16 %v1007
    %v1764 = vunpack.c.l.b16 %v1008
    %v1765 = vunpack.c.h.b16 %v1008
    %v1766 = vunpack.c.l.b16 %v1009
    %v1767 = vunpack.c.h.b16 %v1009
    %v1768 = vunpack.c.l.b16 %v1010
    %v1769 = vunpack.c.h.b16 %v1010
    %v1770 = vunpack.c.l.b16 %v1011
    %v1771 = vunpack.c.h.b16 %v1011
    %v1772 = vunpack.c.l.b16 %v1012
    %v1773 = vunpack.c.h.b16 %v1012
    %v1774 = vunpack.c.l.b16 %v1013
    %v1775 = vunpack.c.h.b16 %v1013
    %v1776 = vunpack.c.l.b16 %v1014
    %v1777 = vunpack.c.h.b16 %v1014
    %v1778 = vunpack.c.l.b16 %v1015
    %v1779 = vunpack.c.h.b16 %v1015
    %v1780 = vunpack.c.l.b16 %v1016
    %v1781 = vunpack.c.h.b16 %v1016
    %v1782 = vunpack.c.l.b16 %v1017
    %v1783 = vunpack.c.h.b16 %v1017
    %v1784 = vunpack.c.l.b16 %v1018
    %v1785 = vunpack.c.h.b16 %v1018
    %v1786 = vunpack.c.l.b16 %v1019
    %v1787 = vunpack.c.h.b16 %v1019
    %v1788 = vunpack.c.l.b16 %v1020
    %v1789 = vunpack.c.h.b16 %v1020
    %v1790 = vunpack.c.l.b16 %v1021
    %v1791 = vunpack.c.h.b16 %v1021
    %v1792 = vunpack.c.l.b16 %v1022
    %v1793 = vunpack.c.h.b16 %v1022
    %v1794 = vunpack.c.l.b16 %v1023
    %v1795 = vunpack.c.h.b16 %v1023
    %v1796 = vunpack.c.l.b16 %v1024
    %v1797 = vunpack.c.h.b16 %v1024
    %v1798 = vunpack.c.l.b16 %v1025
    %v1799 = vunpack.c.h.b16 %v1025
    %v1800 = vunpack.c.l.b16 %v1026
    %v1801 = vunpack.c.h.b16 %v1026
    %v1802 = vunpack.c.l.b16 %v1027
    %v1803 = vunpack.c.h.b16 %v1027
    %v1804 = vunpack.c.l.b16 %v1028
    %v1805 = vunpack.c.h.b16 %v1028
    %v1806 = vunpack.c.l.b16 %v1029
    %v1807 = vunpack.c.h.b16 %v1029
    %v1808 = vunpack.c.l.b16 %v1030
    %v1809 = vunpack.c.h.b16 %v1030
    %v1810 = vunpack.c.l.b16 %v1031
    %v1811 = vunpack.c.h.b16 %v1031
    %v1812 = vunpack.c.l.b16 %v1032
    %v1813 = vunpack.c.h.b16 %v1032
    %v1814 = vunpack.c.l.b16 %v1033
    %v1815 = vunpack.c.h.b16 %v1033
    %v1816 = vunpack.c.l.b16 %v1034
    %v1817 = vunpack.c.h.b16 %v1034
    %v1818 = vunpack.c.l.b16 %v1035
    %v1819 = vunpack.c.h.b16 %v1035
    %v1820 = vunpack.c.l.b16 %v1036
    %v1821 = vunpack.c.h.b16 %v1036
    %v1822 = vunpack.c.l.b16 %v1037
    %v1823 = vunpack.c.h.b16 %v1037
    %v1824 = vunpack.c.l.b16 %v1038
    %v1825 = vunpack.c.h.b16 %v1038
    %v1826 = vunpack.c.l.b16 %v1039
    %v1827 = vunpack.c.h.b16 %v1039
    %v1828 = vunpack.c.l.b16 %v1040
    %v1829 = vunpack.c.h.b16 %v1040
    %v1830 = vunpack.c.l.b16 %v1041
    %v1831 = vunpack.c.h.b16 %v1041
    %v1832 = vunpack.c.l.b16 %v1042
    %v1833 = vunpack.c.h.b16 %v1042
    %v1834 = vpack.c.b16 %v1326, %v1322
    %v1835 = vpack.c.b16 %v1327, %v1323
    %v1836 = vpack.c.b16 %v1328, %v1324
    %v1837 = vpack.c.b16 %v1329, %v1325
    %v1838 = vpack.c.b16 %v1334, %v1330
    %v1839 = vpack.c.b16 %v1335, %v1331
    %v1840 = vpack.c.b16 %v1336, %v1332
    %v1841 = vpack.c.b16 %v1337, %v1333
    %v1842 = vpack.c.b16 %v1342, %v1338
    %v1843 = vpack.c.b16 %v1343, %v1339
    %v1844 = vpack.c.b16 %v1344, %v1340
    %v1845 = vpack.c.b16 %v1345, %v1341
    %v1846 = vpack.c.b16 %v1350, %v1346
    %v1847 = vpack.c.b16 %v1351, %v1347
    %v1848 = vpack.c.b16 %v1352, %v1348
    %v1849 = vpack.c.b16 %v1353, %v1349
    %v1850 = vpack.c.b16 %v1358, %v1354
    %v1851 = vpack.c.b16 %v1359, %v1355
    %v1852 = vpack.c.b16 %v1360, %v1356
    %v1853 = vpack.c.b16 %v1361, %v1357
    %v1854 = vpack.c.b16 %v1366, %v1362
    %v1855 = vpack.c.b16 %v1367, %v1363
    %v1856 = vpack.c.b16 %v1368, %v1364
    %v1857 = vpack.c.b16 %v1369, %v1365
    %v1858 = vpack.c.b16 %v1374, %v1370
    %v1859 = vpack.c.b16 %v1375, %v1371
    %v1860 = vpack.c.b16 %v1376, %v1372
    %v1861 = vpack.c.b16 %v1377, %v1373
    %v1862 = vpack.c.b16 %v1382, %v1378
    %v1863 = vpack.c.b16 %v1383, %v1379
    %v1864 = vpack.c.b16 %v1384, %v1380
    %v1865 = vpack.c.b16 %v1385, %v1381
    %v1866 = vpack.c.b16 %v1390, %v1386
    %v1867 = vpack.c.b16 %v1391, %v1387
    %v1868 = vpack.c.b16 %v1392, %v1388
    %v1869 = vpack.c.b16 %v1393, %v1389
    %v1870 = vpack.c.b16 %v1398, %v1394
    %v1871 = vpack.c.b16 %v1399, %v1395
    %v1872 = vpack.c.b16 %v1400, %v1396
    %v1873 = vpack.c.b16 %v1401, %v1397
    %v1874 = vpack.c.b16 %v1406, %v1402
    %v1875 = vpack.c.b16 %v1407, %v1403
    %v1876 = vpack.c.b16 %v1408, %v1404
    %v1877 = vpack.c.b16 %v1409, %v1405
    %v1878 = vpack.c.b16 %v1414, %v1410
    %v1879 = vpack.c.b16 %v1415, %v1411
    %v1880 = vpack.c.b16 %v1416, %v1412
    %v1881 = vpack.c.b16 %v1417, %v1413
    %v1882 = vpack.c.b16 %v1422, %v1418
    %v1883 = vpack.c.b16 %v1423, %v1419
    %v1884 = vpack.c.b16 %v1424, %v1420
    %v1885 = vpack.c.b16 %v1425, %v1421
    %v1886 = vpack.c.b16 %v1430, %v1426
    %v1887 = vpack.c.b16 %v1431, %v1427
    %v1888 = vpack.c.b16 %v1432, %v1428
    %v1889 = vpack.c.b16 %v1433, %v1429
    %v1890 = vpack.c.b16 %v1438, %v1434
    %v1891 = vpack.c.b16 %v1439, %v1435
    %v1892 = vpack.c.b16 %v1440, %v1436
    %v1893 = vpack.c.b16 %v1441, %v1437
    %v1894 = vpack.c.b16 %v1446, %v1442
    %v1895 = vpack.c.b16 %v1447, %v1443
    %v1896 = vpack.c.b16 %v1448, %v1444
    %v1897 = vpack.c.b16 %v1449, %v1445
    %v1898 = vpack.c.b16 %v1454, %v1450
    %v1899 = vpack.c.b16 %v1455, %v1451
    %v1900 = vpack.c.b16 %v1456, %v1452
    %v1901 = vpack.c.b16 %v1457, %v1453
    %v1902 = vpack.c.b16 %v1462, %v1458
    %v1903 = vpack.c.b16 %v1463, %v1459
    %v1904 = vpack.c.b16 %v1464, %v1460
    %v1905 = vpack.c.b16 %v1465, %v1461
    %v1906 = vpack.c.b16 %v1470, %v1466
    %v1907 = vpack.c.b16 %v1471, %v1467
    %v1908 = vpack.c.b16 %v1472, %v1468
    %v1909 = vpack.c.b16 %v1473, %v1469
    %v1910 = vpack.c.b16 %v1478, %v1474
    %v1911 = vpack.c.b16 %v1479, %v1475
    %v1912 = vpack.c.b16 %v1480, %v1476
    %v1913 = vpack.c.b16 %v1481, %v1477
    %v1914 = vpack.c.b16 %v1486, %v1482
    %v1915 = vpack.c.b16 %v1487, %v1483
    %v1916 = vpack.c.b16 %v1488, %v1484
    %v1917 = vpack.c.b16 %v1489, %v1485
    %v1918 = vpack.c.b16 %v1494, %v1490
    %v1919 = vpack.c.b16 %v1495, %v1491
    %v1920 = vpack.c.b16 %v1496, %v1492
    %v1921 = vpack.c.b16 %v1497, %v1493
    %v1922 = vpack.c.b16 %v1502, %v1498
    %v1923 = vpack.c.b16 %v1503, %v1499
    %v1924 = vpack.c.b16 %v1504, %v1500
    %v1925 = vpack.c.b16 %v1505, %v1501
    %v1926 = vpack.c.b16 %v1510, %v1506
    %v1927 = vpack.c.b16 %v1511, %v1507
    %v1928 = vpack.c.b16 %v1512, %v1508
    %v1929 = vpack.c.b16 %v1513, %v1509
    %v1930 = vpack.c.b16 %v1518, %v1514
    %v1931 = vpack.c.b16 %v1519, %v1515
    %v1932 = vpack.c.b16 %v1520, %v1516
    %v1933 = vpack.c.b16 %v1521, %v1517
    %v1934 = vpack.c.b16 %v1526, %v1522
    %v1935 = vpack.c.b16 %v1527, %v1523
    %v1936 = vpack.c.b16 %v1528, %v1524
    %v1937 = vpack.c.b16 %v1529, %v1525
    %v1938 = vpack.c.b16 %v1534, %v1530
    %v1939 = vpack.c.b16 %v1535, %v1531
    %v1940 = vpack.c.b16 %v1536, %v1532
    %v1941 = vpack.c.b16 %v1537, %v1533
    %v1942 = vpack.c.b16 %v1542, %v1538
    %v1943 = vpack.c.b16 %v1543, %v1539
    %v1944 = vpack.c.b16 %v1544, %v1540
    %v1945 = vpack.c.b16 %v1545, %v1541
    %v1946 = vpack.c.b16 %v1550, %v1546
    %v1947 = vpack.c.b16 %v1551, %v1547
    %v1948 = vpack.c.b16 %v1552, %v1548
    %v1949 = vpack.c.b16 %v1553, %v1549
    %v1950 = vpack.c.b16 %v1558, %v1554
    %v1951 = vpack.c.b16 %v1559, %v1555
    %v1952 = vpack.c.b16 %v1560, %v1556
    %v1953 = vpack.c.b16 %v1561, %v1557
    %v1954 = vpack.c.b16 %v1566, %v1562
    %v1955 = vpack.c.b16 %v1567, %v1563
    %v1956 = vpack.c.b16 %v1568, %v1564
    %v1957 = vpack.c.b16 %v1569, %v1565
    %v1958 = vpack.c.b16 %v1574, %v1570
    %v1959 = vpack.c.b16 %v1575, %v1571
    %v1960 = vpack.c.b16 %v1576, %v1572
    %v1961 = vpack.c.b16 %v1577, %v1573
    %v1962 = vpack.c.b16 %v1582, %v1578
    %v1963 = vpack.c.b16 %v1583, %v1579
    %v1964 = vpack.c.b16 %v1584, %v1580
    %v1965 = vpack.c.b16 %v1585, %v1581
    %v1966 = vpack.c.b16 %v1590, %v1586
    %v1967 = vpack.c.b16 %v1591, %v1587
    %v1968 = vpack.c.b16 %v1592, %v1588
    %v1969 = vpack.c.b16 %v1593, %v1589
    %v1970 = vpack.c.b16 %v1598, %v1594
    %v1971 = vpack.c.b16 %v1599, %v1595
    %v1972 = vpack.c.b16 %v1600, %v1596
    %v1973 = vpack.c.b16 %v1601, %v1597
    %v1974 = vpack.c.b16 %v1606, %v1602
    %v1975 = vpack.c.b16 %v1607, %v1603
    %v1976 = vpack.c.b16 %v1608, %v1604
    %v1977 = vpack.c.b16 %v1609, %v1605
    %v1978 = vpack.c.b16 %v1614, %v1610
    %v1979 = vpack.c.b16 %v1615, %v1611
    %v1980 = vpack.c.b16 %v1616, %v1612
    %v1981 = vpack.c.b16 %v1617, %v1613
    %v1982 = vpack.c.b16 %v1622, %v1618
    %v1983 = vpack.c.b16 %v1623, %v1619
    %v1984 = vpack.c.b16 %v1624, %v1620
    %v1985 = vpack.c.b16 %v1625, %v1621
    %v1986 = vpack.c.b16 %v1630, %v1626
    %v1987 = vpack.c.b16 %v1631, %v1627
    %v1988 = vpack.c.b16 %v1632, %v1628
    %v1989 = vpack.c.b16 %v1633, %v1629
    %v1990 = vpack.c.b16 %v1638, %v1634
    %v1991 = vpack.c.b16 %v1639, %v1635
    %v1992 = vpack.c.b16 %v1640, %v1636
    %v1993 = vpack.c.b16 %v1641, %v1637
    %v1994 = vpack.c.b16 %v1646, %v1642
    %v1995 = vpack.c.b16 %v1647, %v1643
    %v1996 = vpack.c.b16 %v1648, %v1644
    %v1997 = vpack.c.b16 %v1649, %v1645
    %v1998 = vpack.c.b16 %v1654, %v1650
    %v1999 = vpack.c.b16 %v1655, %v1651
    %v2000 = vpack.c.b16 %v1656, %v1652
    %v2001 = vpack.c.b16 %v1657, %v1653
    %v2002 = vpack.c.b16 %v1662, %v1658
    %v2003 = vpack.c.b16 %v1663, %v1659
    %v2004 = vpack.c.b16 %v1664, %v1660
    %v2005 = vpack.c.b16 %v1665, %v1661
    %v2006 = vpack.c.b16 %v1670, %v1666
    %v2007 = vpack.c.b16 %v1671, %v1667
    %v2008 = vpack.c.b16 %v1672, %v1668
    %v2009 = vpack.c.b16 %v1673, %v1669
    %v2010 = vpack.c.b16 %v1678, %v1674
    %v2011 = vpack.c.b16 %v1679, %v1675
    %v2012 = vpack.c.b16 %v1680, %v1676
    %v2013 = vpack.c.b16 %v1681, %v1677
    %v2014 = vpack.c.b16 %v1686, %v1682
    %v2015 = vpack.c.b16 %v1687, %v1683
    %v2016 = vpack.c.b16 %v1688, %v1684
    %v2017 = vpack.c.b16 %v1689, %v1685
    %v2018 = vpack.c.b16 %v1694, %v1690
    %v2019 = vpack.c.b16 %v1695, %v1691
    %v2020 = vpack.c.b16 %v1696, %v1692
    %v2021 = vpack.c.b16 %v1697, %v1693
    %v2022 = vpack.c.b16 %v1702, %v1698
    %v2023 = vpack.c.b16 %v1703, %v1699
    %v2024 = vpack.c.b16 %v1704, %v1700
    %v2025 = vpack.c.b16 %v1705, %v1701
    %v2026 = vpack.c.b16 %v1710, %v1706
    %v2027 = vpack.c.b16 %v1711, %v1707
    %v2028 = vpack.c.b16 %v1712, %v1708
    %v2029 = vpack.c.b16 %v1713, %v1709
    %v2030 = vpack.c.b16 %v1718, %v1714
    %v2031 = vpack.c.b16 %v1719, %v1715
    %v2032 = vpack.c.b16 %v1720, %v1716
    %v2033 = vpack.c.b16 %v1721, %v1717
    %v2034 = vpack.c.b16 %v1726, %v1722
    %v2035 = vpack.c.b16 %v1727, %v1723
    %v2036 = vpack.c.b16 %v1728, %v1724
    %v2037 = vpack.c.b16 %v1729, %v1725
    %v2038 = vpack.c.b16 %v1734, %v1730
    %v2039 = vpack.c.b16 %v1735, %v1731
    %v2040 = vpack.c.b16 %v1736, %v1732
    %v2041 = vpack.c.b16 %v1737, %v1733
    %v2042 = vpack.c.b16 %v1742, %v1738
    %v2043 = vpack.c.b16 %v1743, %v1739
    %v2044 = vpack.c.b16 %v1744, %v1740
    %v2045 = vpack.c.b16 %v1745, %v1741
    %v2046 = vpack.c.b16 %v1750, %v1746
    %v2047 = vpack.c.b16 %v1751, %v1747
    %v2048 = vpack.c.b16 %v1752, %v1748
    %v2049 = vpack.c.b16 %v1753, %v1749
    %v2050 = vpack.c.b16 %v1758, %v1754
    %v2051 = vpack.c.b16 %v1759, %v1755
    %v2052 = vpack.c.b16 %v1760, %v1756
    %v2053 = vpack.c.b16 %v1761, %v1757
    %v2054 = vpack.c.b16 %v1766, %v1762
    %v2055 = vpack.c.b16 %v1767, %v1763
    %v2056 = vpack.c.b16 %v1768, %v1764
    %v2057 = vpack.c.b16 %v1769, %v1765
    %v2058 = vpack.c.b16 %v1774, %v1770
    %v2059 = vpack.c.b16 %v1775, %v1771
    %v2060 = vpack.c.b16 %v1776, %v1772
    %v2061 = vpack.c.b16 %v1777, %v1773
    %v2062 = vpack.c.b16 %v1782, %v1778
    %v2063 = vpack.c.b16 %v1783, %v1779
    %v2064 = vpack.c.b16 %v1784, %v1780
    %v2065 = vpack.c.b16 %v1785, %v1781
    %v2066 = vpack.c.b16 %v1790, %v1786
    %v2067 = vpack.c.b16 %v1791, %v1787
    %v2068 = vpack.c.b16 %v1792, %v1788
    %v2069 = vpack.c.b16 %v1793, %v1789
    %v2070 = vpack.c.b16 %v1798, %v1794
    %v2071 = vpack.c.b16 %v1799, %v1795
    %v2072 = vpack.c.b16 %v1800, %v1796
    %v2073 = vpack.c.b16 %v1801, %v1797
    %v2074 = vpack.c.b16 %v1806, %v1802
    %v2075 = vpack.c.b16 %v1807, %v1803
    %v2076 = vpack.c.b16 %v1808, %v1804
    %v2077 = vpack.c.b16 %v1809, %v1805
    %v2078 = vpack.c.b16 %v1814, %v1810
    %v2079 = vpack.c.b16 %v1815, %v1811
    %v2080 = vpack.c.b16 %v1816, %v1812
    %v2081 = vpack.c.b16 %v1817, %v1813
    %v2082 = vpack.c.b16 %v1822, %v1818
    %v2083 = vpack.c.b16 %v1823, %v1819
    %v2084 = vpack.c.b16 %v1824, %v1820
    %v2085 = vpack.c.b16 %v1825, %v1821
    %v2086 = vpack.c.b16 %v1830, %v1826
    %v2087 = vpack.c.b16 %v1831, %v1827
    %v2088 = vpack.c.b16 %v1832, %v1828
    %v2089 = vpack.c.b16 %v1833, %v1829
    %2346 = vmatprep.subr.bf16.mxu0 %v1863
    %2347 = vmatpush1.bf16.msra.mxu0 %v1862
    %2348 = vmatprep.subr.bf16.mxu0 %v1859
    %2349 = vmatpush1.bf16.msra.mxu0 %v1858
    %2350 = vmatprep.subr.bf16.mxu0 %v1855
    %2351 = vmatpush1.bf16.msra.mxu0 %v1854
    %2352 = vmatprep.subr.bf16.mxu0 %v1851
    %2353 = vmatpush1.bf16.msra.mxu0 %v1850
    %2354 = vmatprep.subr.bf16.mxu0 %v1847
    %2355 = vmatpush1.bf16.msra.mxu0 %v1846
    %2356 = vmatprep.subr.bf16.mxu0 %v1843
    %2357 = vmatpush1.bf16.msra.mxu0 %v1842
    %2358 = vmatprep.subr.bf16.mxu0 %v1839
    %2359 = vmatpush1.bf16.msra.mxu0 %v1838
    %2360 = vmatprep.subr.bf16.mxu0 %v1835
    %2361 = vmatpush1.bf16.msra.mxu0 %v1834
    %2362 = vmatprep.subr.bf16.mxu0 %v1895
    %2363 = vmatpush2.bf16.msra.mxu0 %v1894
    %2364 = vmatprep.subr.bf16.mxu0 %v1891
    %2365 = vmatpush2.bf16.msra.mxu0 %v1890
    %2366 = vmatprep.subr.bf16.mxu0 %v1887
    %2367 = vmatpush2.bf16.msra.mxu0 %v1886
    %2368 = vmatprep.subr.bf16.mxu0 %v1883
    %2369 = vmatpush2.bf16.msra.mxu0 %v1882
    %2370 = vmatprep.subr.bf16.mxu0 %v1879
    %2371 = vmatpush2.bf16.msra.mxu0 %v1878
    %2372 = vmatprep.subr.bf16.mxu0 %v1875
    %2373 = vmatpush2.bf16.msra.mxu0 %v1874
    %2374 = vmatprep.subr.bf16.mxu0 %v1871
    %2375 = vmatpush2.bf16.msra.mxu0 %v1870
    %2376 = vmatprep.subr.bf16.mxu0 %v1867
    %2377 = vmatpush2.bf16.msra.mxu0 %v1866
    %2378 = vmatprep.mubr.bf16.mxu0 %v780
    %2379 = vmatmul.mubr.bf16.gmra.mxu0 %v779
    %v2380 = vpop.f32.mrf.mxu0
    %v2381 = vadd.f32 %v1049, %v2380
    %v2382 = vpop.f32.mrf.mxu0
    %v2383 = vadd.f32 %v1053, %v2382
    %v2384 = vpop.f32.mrf.mxu0
    %v2385 = vadd.f32 %v1049, %v2384
    %v2386 = vpop.f32.mrf.mxu0
    %v2387 = vadd.f32 %v1053, %v2386
    %2388 = vdwg.mxu0
    %2389 = vmatprep.subr.bf16.mxu0 %v1927
    %2390 = vmatpush1.bf16.msra.mxu0 %v1926
    %2391 = vmatprep.subr.bf16.mxu0 %v1923
    %2392 = vmatpush1.bf16.msra.mxu0 %v1922
    %2393 = vmatprep.subr.bf16.mxu0 %v1919
    %2394 = vmatpush1.bf16.msra.mxu0 %v1918
    %2395 = vmatprep.subr.bf16.mxu0 %v1915
    %2396 = vmatpush1.bf16.msra.mxu0 %v1914
    %2397 = vmatprep.subr.bf16.mxu0 %v1911
    %2398 = vmatpush1.bf16.msra.mxu0 %v1910
    %2399 = vmatprep.subr.bf16.mxu0 %v1907
    %2400 = vmatpush1.bf16.msra.mxu0 %v1906
    %2401 = vmatprep.subr.bf16.mxu0 %v1903
    %2402 = vmatpush1.bf16.msra.mxu0 %v1902
    %2403 = vmatprep.subr.bf16.mxu0 %v1899
    %2404 = vmatpush1.bf16.msra.mxu0 %v1898
    %2405 = vmatprep.subr.bf16.mxu0 %v1959
    %2406 = vmatpush2.bf16.msra.mxu0 %v1958
    %2407 = vmatprep.subr.bf16.mxu0 %v1955
    %2408 = vmatpush2.bf16.msra.mxu0 %v1954
    %2409 = vmatprep.subr.bf16.mxu0 %v1951
    %2410 = vmatpush2.bf16.msra.mxu0 %v1950
    %2411 = vmatprep.subr.bf16.mxu0 %v1947
    %2412 = vmatpush2.bf16.msra.mxu0 %v1946
    %2413 = vmatprep.subr.bf16.mxu0 %v1943
    %2414 = vmatpush2.bf16.msra.mxu0 %v1942
    %2415 = vmatprep.subr.bf16.mxu0 %v1939
    %2416 = vmatpush2.bf16.msra.mxu0 %v1938
    %2417 = vmatprep.subr.bf16.mxu0 %v1935
    %2418 = vmatpush2.bf16.msra.mxu0 %v1934
    %2419 = vmatprep.subr.bf16.mxu0 %v1931
    %2420 = vmatpush2.bf16.msra.mxu0 %v1930
    %2421 = vmatprep.mubr.bf16.mxu0 %v782
    %2422 = vmatmul.mubr.bf16.gmra.mxu0 %v781
    %v2423 = vpop.f32.mrf.mxu0
    %v2424 = vadd.f32 %v2381, %v2423
    %v2425 = vpop.f32.mrf.mxu0
    %v2426 = vadd.f32 %v2383, %v2425
    %v2427 = vpop.f32.mrf.mxu0
    %v2428 = vadd.f32 %v2385, %v2427
    %v2429 = vpop.f32.mrf.mxu0
    %v2430 = vadd.f32 %v2387, %v2429
    %2431 = vdwg.mxu0
    %2432 = vmatprep.subr.bf16.mxu0 %v1991
    %2433 = vmatpush1.bf16.msra.mxu0 %v1990
    %2434 = vmatprep.subr.bf16.mxu0 %v1987
    %2435 = vmatpush1.bf16.msra.mxu0 %v1986
    %2436 = vmatprep.subr.bf16.mxu0 %v1983
    %2437 = vmatpush1.bf16.msra.mxu0 %v1982
    %2438 = vmatprep.subr.bf16.mxu0 %v1979
    %2439 = vmatpush1.bf16.msra.mxu0 %v1978
    %2440 = vmatprep.subr.bf16.mxu0 %v1975
    %2441 = vmatpush1.bf16.msra.mxu0 %v1974
    %2442 = vmatprep.subr.bf16.mxu0 %v1971
    %2443 = vmatpush1.bf16.msra.mxu0 %v1970
    %2444 = vmatprep.subr.bf16.mxu0 %v1967
    %2445 = vmatpush1.bf16.msra.mxu0 %v1966
    %2446 = vmatprep.subr.bf16.mxu0 %v1963
    %2447 = vmatpush1.bf16.msra.mxu0 %v1962
    %2448 = vmatprep.subr.bf16.mxu0 %v2023
    %2449 = vmatpush2.bf16.msra.mxu0 %v2022
    %2450 = vmatprep.subr.bf16.mxu0 %v2019
    %2451 = vmatpush2.bf16.msra.mxu0 %v2018
    %2452 = vmatprep.subr.bf16.mxu0 %v2015
    %2453 = vmatpush2.bf16.msra.mxu0 %v2014
    %2454 = vmatprep.subr.bf16.mxu0 %v2011
    %2455 = vmatpush2.bf16.msra.mxu0 %v2010
    %2456 = vmatprep.subr.bf16.mxu0 %v2007
    %2457 = vmatpush2.bf16.msra.mxu0 %v2006
    %2458 = vmatprep.subr.bf16.mxu0 %v2003
    %2459 = vmatpush2.bf16.msra.mxu0 %v2002
    %2460 = vmatprep.subr.bf16.mxu0 %v1999
    %2461 = vmatpush2.bf16.msra.mxu0 %v1998
    %2462 = vmatprep.subr.bf16.mxu0 %v1995
    %2463 = vmatpush2.bf16.msra.mxu0 %v1994
    %2464 = vmatprep.mubr.bf16.mxu0 %v784
    %2465 = vmatmul.mubr.bf16.gmra.mxu0 %v783
    %v2466 = vpop.f32.mrf.mxu0
    %v2467 = vadd.f32 %v2424, %v2466
    %v2468 = vpop.f32.mrf.mxu0
    %v2469 = vadd.f32 %v2426, %v2468
    %v2470 = vpop.f32.mrf.mxu0
    %v2471 = vadd.f32 %v2428, %v2470
    %v2472 = vpop.f32.mrf.mxu0
    %v2473 = vadd.f32 %v2430, %v2472
    %2474 = vdwg.mxu0
    %2475 = vmatprep.subr.bf16.mxu0 %v2055
    %2476 = vmatpush1.bf16.msra.mxu0 %v2054
    %2477 = vmatprep.subr.bf16.mxu0 %v2051
    %2478 = vmatpush1.bf16.msra.mxu0 %v2050
    %2479 = vmatprep.subr.bf16.mxu0 %v2047
    %2480 = vmatpush1.bf16.msra.mxu0 %v2046
    %2481 = vmatprep.subr.bf16.mxu0 %v2043
    %2482 = vmatpush1.bf16.msra.mxu0 %v2042
    %2483 = vmatprep.subr.bf16.mxu0 %v2039
    %2484 = vmatpush1.bf16.msra.mxu0 %v2038
    %2485 = vmatprep.subr.bf16.mxu0 %v2035
    %2486 = vmatpush1.bf16.msra.mxu0 %v2034
    %2487 = vmatprep.subr.bf16.mxu0 %v2031
    %2488 = vmatpush1.bf16.msra.mxu0 %v2030
    %2489 = vmatprep.subr.bf16.mxu0 %v2027
    %2490 = vmatpush1.bf16.msra.mxu0 %v2026
    %2491 = vmatprep.subr.bf16.mxu0 %v2087
    %2492 = vmatpush2.bf16.msra.mxu0 %v2086
    %2493 = vmatprep.subr.bf16.mxu0 %v2083
    %2494 = vmatpush2.bf16.msra.mxu0 %v2082
    %2495 = vmatprep.subr.bf16.mxu0 %v2079
    %2496 = vmatpush2.bf16.msra.mxu0 %v2078
    %2497 = vmatprep.subr.bf16.mxu0 %v2075
    %2498 = vmatpush2.bf16.msra.mxu0 %v2074
    %2499 = vmatprep.subr.bf16.mxu0 %v2071
    %2500 = vmatpush2.bf16.msra.mxu0 %v2070
    %2501 = vmatprep.subr.bf16.mxu0 %v2067
    %2502 = vmatpush2.bf16.msra.mxu0 %v2066
    %2503 = vmatprep.subr.bf16.mxu0 %v2063
    %2504 = vmatpush2.bf16.msra.mxu0 %v2062
    %2505 = vmatprep.subr.bf16.mxu0 %v2059
    %2506 = vmatpush2.bf16.msra.mxu0 %v2058
    %2507 = vmatprep.mubr.bf16.mxu0 %v786
    %2508 = vmatmul.mubr.bf16.gmra.mxu0 %v785
    %v2509 = vpop.f32.mrf.mxu0
    %v2510 = vadd.f32 %v2467, %v2509
    %v2511 = vpop.f32.mrf.mxu0
    %v2512 = vadd.f32 %v2469, %v2511
    %v2513 = vpop.f32.mrf.mxu0
    %v2514 = vadd.f32 %v2471, %v2513
    %v2515 = vpop.f32.mrf.mxu0
    %v2516 = vadd.f32 %v2473, %v2515
    %2517 = vdwg.mxu0
    %2518 = vmatprep.subr.bf16.mxu0 %v1865
    %2519 = vmatpush1.bf16.msra.mxu0 %v1864
    %2520 = vmatprep.subr.bf16.mxu0 %v1861
    %2521 = vmatpush1.bf16.msra.mxu0 %v1860
    %2522 = vmatprep.subr.bf16.mxu0 %v1857
    %2523 = vmatpush1.bf16.msra.mxu0 %v1856
    %2524 = vmatprep.subr.bf16.mxu0 %v1853
    %2525 = vmatpush1.bf16.msra.mxu0 %v1852
    %2526 = vmatprep.subr.bf16.mxu0 %v1849
    %2527 = vmatpush1.bf16.msra.mxu0 %v1848
    %2528 = vmatprep.subr.bf16.mxu0 %v1845
    %2529 = vmatpush1.bf16.msra.mxu0 %v1844
    %2530 = vmatprep.subr.bf16.mxu0 %v1841
    %2531 = vmatpush1.bf16.msra.mxu0 %v1840
    %2532 = vmatprep.subr.bf16.mxu0 %v1837
    %2533 = vmatpush1.bf16.msra.mxu0 %v1836
    %2534 = vmatprep.subr.bf16.mxu0 %v1897
    %2535 = vmatpush2.bf16.msra.mxu0 %v1896
    %2536 = vmatprep.subr.bf16.mxu0 %v1893
    %2537 = vmatpush2.bf16.msra.mxu0 %v1892
    %2538 = vmatprep.subr.bf16.mxu0 %v1889
    %2539 = vmatpush2.bf16.msra.mxu0 %v1888
    %2540 = vmatprep.subr.bf16.mxu0 %v1885
    %2541 = vmatpush2.bf16.msra.mxu0 %v1884
    %2542 = vmatprep.subr.bf16.mxu0 %v1881
    %2543 = vmatpush2.bf16.msra.mxu0 %v1880
    %2544 = vmatprep.subr.bf16.mxu0 %v1877
    %2545 = vmatpush2.bf16.msra.mxu0 %v1876
    %2546 = vmatprep.subr.bf16.mxu0 %v1873
    %2547 = vmatpush2.bf16.msra.mxu0 %v1872
    %2548 = vmatprep.subr.bf16.mxu0 %v1869
    %2549 = vmatpush2.bf16.msra.mxu0 %v1868
    %2550 = vmatprep.mubr.bf16.mxu0 %v780
    %2551 = vmatmul.mubr.bf16.gmra.mxu0 %v779
    %v2552 = vpop.f32.mrf.mxu0
    %v2553 = vadd.f32 %v1057, %v2552
    %v2554 = vpop.f32.mrf.mxu0
    %v2555 = vadd.f32 %v1061, %v2554
    %v2556 = vpop.f32.mrf.mxu0
    %v2557 = vadd.f32 %v1057, %v2556
    %v2558 = vpop.f32.mrf.mxu0
    %v2559 = vadd.f32 %v1061, %v2558
    %2560 = vdwg.mxu0
    %2561 = vmatprep.subr.bf16.mxu0 %v1929
    %2562 = vmatpush1.bf16.msra.mxu0 %v1928
    %2563 = vmatprep.subr.bf16.mxu0 %v1925
    %2564 = vmatpush1.bf16.msra.mxu0 %v1924
    %2565 = vmatprep.subr.bf16.mxu0 %v1921
    %2566 = vmatpush1.bf16.msra.mxu0 %v1920
    %2567 = vmatprep.subr.bf16.mxu0 %v1917
    %2568 = vmatpush1.bf16.msra.mxu0 %v1916
    %2569 = vmatprep.subr.bf16.mxu0 %v1913
    %2570 = vmatpush1.bf16.msra.mxu0 %v1912
    %2571 = vmatprep.subr.bf16.mxu0 %v1909
    %2572 = vmatpush1.bf16.msra.mxu0 %v1908
    %2573 = vmatprep.subr.bf16.mxu0 %v1905
    %2574 = vmatpush1.bf16.msra.mxu0 %v1904
    %2575 = vmatprep.subr.bf16.mxu0 %v1901
    %2576 = vmatpush1.bf16.msra.mxu0 %v1900
    %2577 = vmatprep.subr.bf16.mxu0 %v1961
    %2578 = vmatpush2.bf16.msra.mxu0 %v1960
    %2579 = vmatprep.subr.bf16.mxu0 %v1957
    %2580 = vmatpush2.bf16.msra.mxu0 %v1956
    %2581 = vmatprep.subr.bf16.mxu0 %v1953
    %2582 = vmatpush2.bf16.msra.mxu0 %v1952
    %2583 = vmatprep.subr.bf16.mxu0 %v1949
    %2584 = vmatpush2.bf16.msra.mxu0 %v1948
    %2585 = vmatprep.subr.bf16.mxu0 %v1945
    %2586 = vmatpush2.bf16.msra.mxu0 %v1944
    %2587 = vmatprep.subr.bf16.mxu0 %v1941
    %2588 = vmatpush2.bf16.msra.mxu0 %v1940
    %2589 = vmatprep.subr.bf16.mxu0 %v1937
    %2590 = vmatpush2.bf16.msra.mxu0 %v1936
    %2591 = vmatprep.subr.bf16.mxu0 %v1933
    %2592 = vmatpush2.bf16.msra.mxu0 %v1932
    %2593 = vmatprep.mubr.bf16.mxu0 %v782
    %2594 = vmatmul.mubr.bf16.gmra.mxu0 %v781
    %v2595 = vpop.f32.mrf.mxu0
    %v2596 = vadd.f32 %v2553, %v2595
    %v2597 = vpop.f32.mrf.mxu0
    %v2598 = vadd.f32 %v2555, %v2597
    %v2599 = vpop.f32.mrf.mxu0
    %v2600 = vadd.f32 %v2557, %v2599
    %v2601 = vpop.f32.mrf.mxu0
    %v2602 = vadd.f32 %v2559, %v2601
    %2603 = vdwg.mxu0
    %2604 = vmatprep.subr.bf16.mxu0 %v1993
    %2605 = vmatpush1.bf16.msra.mxu0 %v1992
    %2606 = vmatprep.subr.bf16.mxu0 %v1989
    %2607 = vmatpush1.bf16.msra.mxu0 %v1988
    %2608 = vmatprep.subr.bf16.mxu0 %v1985
    %2609 = vmatpush1.bf16.msra.mxu0 %v1984
    %2610 = vmatprep.subr.bf16.mxu0 %v1981
    %2611 = vmatpush1.bf16.msra.mxu0 %v1980
    %2612 = vmatprep.subr.bf16.mxu0 %v1977
    %2613 = vmatpush1.bf16.msra.mxu0 %v1976
    %2614 = vmatprep.subr.bf16.mxu0 %v1973
    %2615 = vmatpush1.bf16.msra.mxu0 %v1972
    %2616 = vmatprep.subr.bf16.mxu0 %v1969
    %2617 = vmatpush1.bf16.msra.mxu0 %v1968
    %2618 = vmatprep.subr.bf16.mxu0 %v1965
    %2619 = vmatpush1.bf16.msra.mxu0 %v1964
    %2620 = vmatprep.subr.bf16.mxu0 %v2025
    %2621 = vmatpush2.bf16.msra.mxu0 %v2024
    %2622 = vmatprep.subr.bf16.mxu0 %v2021
    %2623 = vmatpush2.bf16.msra.mxu0 %v2020
    %2624 = vmatprep.subr.bf16.mxu0 %v2017
    %2625 = vmatpush2.bf16.msra.mxu0 %v2016
    %2626 = vmatprep.subr.bf16.mxu0 %v2013
    %2627 = vmatpush2.bf16.msra.mxu0 %v2012
    %2628 = vmatprep.subr.bf16.mxu0 %v2009
    %2629 = vmatpush2.bf16.msra.mxu0 %v2008
    %2630 = vmatprep.subr.bf16.mxu0 %v2005
    %2631 = vmatpush2.bf16.msra.mxu0 %v2004
    %2632 = vmatprep.subr.bf16.mxu0 %v2001
    %2633 = vmatpush2.bf16.msra.mxu0 %v2000
    %2634 = vmatprep.subr.bf16.mxu0 %v1997
    %2635 = vmatpush2.bf16.msra.mxu0 %v1996
    %2636 = vmatprep.mubr.bf16.mxu0 %v784
    %2637 = vmatmul.mubr.bf16.gmra.mxu0 %v783
    %v2638 = vpop.f32.mrf.mxu0
    %v2639 = vadd.f32 %v2596, %v2638
    %v2640 = vpop.f32.mrf.mxu0
    %v2641 = vadd.f32 %v2598, %v2640
    %v2642 = vpop.f32.mrf.mxu0
    %v2643 = vadd.f32 %v2600, %v2642
    %v2644 = vpop.f32.mrf.mxu0
    %v2645 = vadd.f32 %v2602, %v2644
    %2646 = vdwg.mxu0
    %2647 = vmatprep.subr.bf16.mxu0 %v2057
    %2648 = vmatpush1.bf16.msra.mxu0 %v2056
    %2649 = vmatprep.subr.bf16.mxu0 %v2053
    %2650 = vmatpush1.bf16.msra.mxu0 %v2052
    %2651 = vmatprep.subr.bf16.mxu0 %v2049
    %2652 = vmatpush1.bf16.msra.mxu0 %v2048
    %2653 = vmatprep.subr.bf16.mxu0 %v2045
    %2654 = vmatpush1.bf16.msra.mxu0 %v2044
    %2655 = vmatprep.subr.bf16.mxu0 %v2041
    %2656 = vmatpush1.bf16.msra.mxu0 %v2040
    %2657 = vmatprep.subr.bf16.mxu0 %v2037
    %2658 = vmatpush1.bf16.msra.mxu0 %v2036
    %2659 = vmatprep.subr.bf16.mxu0 %v2033
    %2660 = vmatpush1.bf16.msra.mxu0 %v2032
    %2661 = vmatprep.subr.bf16.mxu0 %v2029
    %2662 = vmatpush1.bf16.msra.mxu0 %v2028
    %2663 = vmatprep.subr.bf16.mxu0 %v2089
    %2664 = vmatpush2.bf16.msra.mxu0 %v2088
    %2665 = vmatprep.subr.bf16.mxu0 %v2085
    %2666 = vmatpush2.bf16.msra.mxu0 %v2084
    %2667 = vmatprep.subr.bf16.mxu0 %v2081
    %2668 = vmatpush2.bf16.msra.mxu0 %v2080
    %2669 = vmatprep.subr.bf16.mxu0 %v2077
    %2670 = vmatpush2.bf16.msra.mxu0 %v2076
    %2671 = vmatprep.subr.bf16.mxu0 %v2073
    %2672 = vmatpush2.bf16.msra.mxu0 %v2072
    %2673 = vmatprep.subr.bf16.mxu0 %v2069
    %2674 = vmatpush2.bf16.msra.mxu0 %v2068
    %2675 = vmatprep.subr.bf16.mxu0 %v2065
    %2676 = vmatpush2.bf16.msra.mxu0 %v2064
    %2677 = vmatprep.subr.bf16.mxu0 %v2061
    %2678 = vmatpush2.bf16.msra.mxu0 %v2060
    %2679 = vmatprep.mubr.bf16.mxu0 %v786
    %2680 = vmatmul.mubr.bf16.gmra.mxu0 %v785
    %v2681 = vpop.f32.mrf.mxu0
    %v2682 = vadd.f32 %v2639, %v2681
    %v2683 = vpop.f32.mrf.mxu0
    %v2684 = vadd.f32 %v2641, %v2683
    %v2685 = vpop.f32.mrf.mxu0
    %v2686 = vadd.f32 %v2643, %v2685
    %v2687 = vpop.f32.mrf.mxu0
    %v2688 = vadd.f32 %v2645, %v2687
    %2689 = vdwg.mxu0
    %v2690 = vmax.f32 %v2510, 0.0
    %v2691 = vmax.f32 %v2512, 0.0
    %v2692 = vmax.f32 %v2682, 0.0
    %v2693 = vmax.f32 %v2684, 0.0
    %v2694 = vmax.f32 %v2514, 0.0
    %v2695 = vmax.f32 %v2516, 0.0
    %v2696 = vmax.f32 %v2686, 0.0
    %v2697 = vmax.f32 %v2688, 0.0
    %v2698 = vpack.c.bf16 %v2694, %v2690
    %v2699 = vpack.c.bf16 %v2695, %v2691
    %v2700 = vpack.c.bf16 %v2696, %v2692
    %v2701 = vpack.c.bf16 %v2697, %v2693
    %v2702 = vld [vmem:[#allocation8] sm:$0xff]
    %v2703 = vld [vmem:[#allocation8 + $0x8] sm:$0xff]
    %v2704 = vld [vmem:[#allocation8 + $0x10] sm:$0xff]
    %v2705 = vld [vmem:[#allocation8 + $0x18] sm:$0xff]
    %v2706 = vld [vmem:[#allocation8 + $0x20] sm:$0xff]
    %v2707 = vld [vmem:[#allocation8 + $0x28] sm:$0xff]
    %v2708 = vld [vmem:[#allocation8 + $0x30] sm:$0xff]
    %v2709 = vld [vmem:[#allocation8 + $0x38] sm:$0xff]
    %v2710 = vld [vmem:[#allocation8 + $0x40] sm:$0xff]
    %v2711 = vld [vmem:[#allocation8 + $0x48] sm:$0xff]
    %v2712 = vld [vmem:[#allocation8 + $0x50] sm:$0xff]
    %v2713 = vld [vmem:[#allocation8 + $0x58] sm:$0xff]
    %v2714 = vld [vmem:[#allocation8 + $0x60] sm:$0xff]
    %v2715 = vld [vmem:[#allocation8 + $0x68] sm:$0xff]
    %v2716 = vld [vmem:[#allocation8 + $0x70] sm:$0xff]
    %v2717 = vld [vmem:[#allocation8 + $0x78] sm:$0xff]
    %v2718 = vld [vmem:[#allocation8 + $0x80] sm:$0xff]
    %v2719 = vld [vmem:[#allocation8 + $0x88] sm:$0xff]
    %v2720 = vld [vmem:[#allocation8 + $0x90] sm:$0xff]
    %v2721 = vld [vmem:[#allocation8 + $0x98] sm:$0xff]
    %v2722 = vld [vmem:[#allocation8 + $0xa0] sm:$0xff]
    %v2723 = vld [vmem:[#allocation8 + $0xa8] sm:$0xff]
    %v2724 = vld [vmem:[#allocation8 + $0xb0] sm:$0xff]
    %v2725 = vld [vmem:[#allocation8 + $0xb8] sm:$0xff]
    %v2726 = vld [vmem:[#allocation8 + $0xc0] sm:$0xff]
    %v2727 = vld [vmem:[#allocation8 + $0xc8] sm:$0xff]
    %v2728 = vld [vmem:[#allocation8 + $0xd0] sm:$0xff]
    %v2729 = vld [vmem:[#allocation8 + $0xd8] sm:$0xff]
    %v2730 = vld [vmem:[#allocation8 + $0xe0] sm:$0xff]
    %v2731 = vld [vmem:[#allocation8 + $0xe8] sm:$0xff]
    %v2732 = vld [vmem:[#allocation8 + $0xf0] sm:$0xff]
    %v2733 = vld [vmem:[#allocation8 + $0xf8] sm:$0xff]
    %v2734 = vld [vmem:[#allocation8 + $0x100] sm:$0xff]
    %v2735 = vld [vmem:[#allocation8 + $0x108] sm:$0xff]
    %v2736 = vld [vmem:[#allocation8 + $0x110] sm:$0xff]
    %v2737 = vld [vmem:[#allocation8 + $0x118] sm:$0xff]
    %v2738 = vld [vmem:[#allocation8 + $0x120] sm:$0xff]
    %v2739 = vld [vmem:[#allocation8 + $0x128] sm:$0xff]
    %v2740 = vld [vmem:[#allocation8 + $0x130] sm:$0xff]
    %v2741 = vld [vmem:[#allocation8 + $0x138] sm:$0xff]
    %v2742 = vld [vmem:[#allocation8 + $0x140] sm:$0xff]
    %v2743 = vld [vmem:[#allocation8 + $0x148] sm:$0xff]
    %v2744 = vld [vmem:[#allocation8 + $0x150] sm:$0xff]
    %v2745 = vld [vmem:[#allocation8 + $0x158] sm:$0xff]
    %v2746 = vld [vmem:[#allocation8 + $0x160] sm:$0xff]
    %v2747 = vld [vmem:[#allocation8 + $0x168] sm:$0xff]
    %v2748 = vld [vmem:[#allocation8 + $0x170] sm:$0xff]
    %v2749 = vld [vmem:[#allocation8 + $0x178] sm:$0xff]
    %v2750 = vld [vmem:[#allocation8 + $0x180] sm:$0xff]
    %v2751 = vld [vmem:[#allocation8 + $0x188] sm:$0xff]
    %v2752 = vld [vmem:[#allocation8 + $0x190] sm:$0xff]
    %v2753 = vld [vmem:[#allocation8 + $0x198] sm:$0xff]
    %v2754 = vld [vmem:[#allocation8 + $0x1a0] sm:$0xff]
    %v2755 = vld [vmem:[#allocation8 + $0x1a8] sm:$0xff]
    %v2756 = vld [vmem:[#allocation8 + $0x1b0] sm:$0xff]
    %v2757 = vld [vmem:[#allocation8 + $0x1b8] sm:$0xff]
    %v2758 = vld [vmem:[#allocation8 + $0x1c0] sm:$0xff]
    %v2759 = vld [vmem:[#allocation8 + $0x1c8] sm:$0xff]
    %v2760 = vld [vmem:[#allocation8 + $0x1d0] sm:$0xff]
    %v2761 = vld [vmem:[#allocation8 + $0x1d8] sm:$0xff]
    %v2762 = vld [vmem:[#allocation8 + $0x1e0] sm:$0xff]
    %v2763 = vld [vmem:[#allocation8 + $0x1e8] sm:$0xff]
    %v2764 = vld [vmem:[#allocation8 + $0x1f0] sm:$0xff]
    %v2765 = vld [vmem:[#allocation8 + $0x1f8] sm:$0xff]
    %s2766 = scalar_lea.vmem %s7, 2
    %v2767 = vld [vmem:[%s2766] ss:$8 sm:$0x3]
    %v2769 = vlaneseq
    %v2770 = vshrl.u32 %v2769, 7
    %v2771 = vsub.s32 0, %v2770
    %v2772 = vrot.slane %v2767, %v2771
    %v2773 = vlaneseq
    %v2774 = vshrl.u32 %v2773, 7
    %v2775 = vsub.s32 1, %v2774
    %v2776 = vrot.slane %v2767, %v2775
    %v2843 = vunpack.c.l.b16 %v2702
    %v2844 = vunpack.c.h.b16 %v2702
    %v2845 = vunpack.c.l.b16 %v2703
    %v2846 = vunpack.c.h.b16 %v2703
    %v2847 = vunpack.c.l.b16 %v2704
    %v2848 = vunpack.c.h.b16 %v2704
    %v2849 = vunpack.c.l.b16 %v2705
    %v2850 = vunpack.c.h.b16 %v2705
    %v2851 = vunpack.c.l.b16 %v2706
    %v2852 = vunpack.c.h.b16 %v2706
    %v2853 = vunpack.c.l.b16 %v2707
    %v2854 = vunpack.c.h.b16 %v2707
    %v2855 = vunpack.c.l.b16 %v2708
    %v2856 = vunpack.c.h.b16 %v2708
    %v2857 = vunpack.c.l.b16 %v2709
    %v2858 = vunpack.c.h.b16 %v2709
    %v2859 = vunpack.c.l.b16 %v2710
    %v2860 = vunpack.c.h.b16 %v2710
    %v2861 = vunpack.c.l.b16 %v2711
    %v2862 = vunpack.c.h.b16 %v2711
    %v2863 = vunpack.c.l.b16 %v2712
    %v2864 = vunpack.c.h.b16 %v2712
    %v2865 = vunpack.c.l.b16 %v2713
    %v2866 = vunpack.c.h.b16 %v2713
    %v2867 = vunpack.c.l.b16 %v2714
    %v2868 = vunpack.c.h.b16 %v2714
    %v2869 = vunpack.c.l.b16 %v2715
    %v2870 = vunpack.c.h.b16 %v2715
    %v2871 = vunpack.c.l.b16 %v2716
    %v2872 = vunpack.c.h.b16 %v2716
    %v2873 = vunpack.c.l.b16 %v2717
    %v2874 = vunpack.c.h.b16 %v2717
    %v2875 = vunpack.c.l.b16 %v2718
    %v2876 = vunpack.c.h.b16 %v2718
    %v2877 = vunpack.c.l.b16 %v2719
    %v2878 = vunpack.c.h.b16 %v2719
    %v2879 = vunpack.c.l.b16 %v2720
    %v2880 = vunpack.c.h.b16 %v2720
    %v2881 = vunpack.c.l.b16 %v2721
    %v2882 = vunpack.c.h.b16 %v2721
    %v2883 = vunpack.c.l.b16 %v2722
    %v2884 = vunpack.c.h.b16 %v2722
    %v2885 = vunpack.c.l.b16 %v2723
    %v2886 = vunpack.c.h.b16 %v2723
    %v2887 = vunpack.c.l.b16 %v2724
    %v2888 = vunpack.c.h.b16 %v2724
    %v2889 = vunpack.c.l.b16 %v2725
    %v2890 = vunpack.c.h.b16 %v2725
    %v2891 = vunpack.c.l.b16 %v2726
    %v2892 = vunpack.c.h.b16 %v2726
    %v2893 = vunpack.c.l.b16 %v2727
    %v2894 = vunpack.c.h.b16 %v2727
    %v2895 = vunpack.c.l.b16 %v2728
    %v2896 = vunpack.c.h.b16 %v2728
    %v2897 = vunpack.c.l.b16 %v2729
    %v2898 = vunpack.c.h.b16 %v2729
    %v2899 = vunpack.c.l.b16 %v2730
    %v2900 = vunpack.c.h.b16 %v2730
    %v2901 = vunpack.c.l.b16 %v2731
    %v2902 = vunpack.c.h.b16 %v2731
    %v2903 = vunpack.c.l.b16 %v2732
    %v2904 = vunpack.c.h.b16 %v2732
    %v2905 = vunpack.c.l.b16 %v2733
    %v2906 = vunpack.c.h.b16 %v2733
    %v2907 = vunpack.c.l.b16 %v2734
    %v2908 = vunpack.c.h.b16 %v2734
    %v2909 = vunpack.c.l.b16 %v2735
    %v2910 = vunpack.c.h.b16 %v2735
    %v2911 = vunpack.c.l.b16 %v2736
    %v2912 = vunpack.c.h.b16 %v2736
    %v2913 = vunpack.c.l.b16 %v2737
    %v2914 = vunpack.c.h.b16 %v2737
    %v2915 = vunpack.c.l.b16 %v2738
    %v2916 = vunpack.c.h.b16 %v2738
    %v2917 = vunpack.c.l.b16 %v2739
    %v2918 = vunpack.c.h.b16 %v2739
    %v2919 = vunpack.c.l.b16 %v2740
    %v2920 = vunpack.c.h.b16 %v2740
    %v2921 = vunpack.c.l.b16 %v2741
    %v2922 = vunpack.c.h.b16 %v2741
    %v2923 = vunpack.c.l.b16 %v2742
    %v2924 = vunpack.c.h.b16 %v2742
    %v2925 = vunpack.c.l.b16 %v2743
    %v2926 = vunpack.c.h.b16 %v2743
    %v2927 = vunpack.c.l.b16 %v2744
    %v2928 = vunpack.c.h.b16 %v2744
    %v2929 = vunpack.c.l.b16 %v2745
    %v2930 = vunpack.c.h.b16 %v2745
    %v2931 = vunpack.c.l.b16 %v2746
    %v2932 = vunpack.c.h.b16 %v2746
    %v2933 = vunpack.c.l.b16 %v2747
    %v2934 = vunpack.c.h.b16 %v2747
    %v2935 = vunpack.c.l.b16 %v2748
    %v2936 = vunpack.c.h.b16 %v2748
    %v2937 = vunpack.c.l.b16 %v2749
    %v2938 = vunpack.c.h.b16 %v2749
    %v2939 = vunpack.c.l.b16 %v2750
    %v2940 = vunpack.c.h.b16 %v2750
    %v2941 = vunpack.c.l.b16 %v2751
    %v2942 = vunpack.c.h.b16 %v2751
    %v2943 = vunpack.c.l.b16 %v2752
    %v2944 = vunpack.c.h.b16 %v2752
    %v2945 = vunpack.c.l.b16 %v2753
    %v2946 = vunpack.c.h.b16 %v2753
    %v2947 = vunpack.c.l.b16 %v2754
    %v2948 = vunpack.c.h.b16 %v2754
    %v2949 = vunpack.c.l.b16 %v2755
    %v2950 = vunpack.c.h.b16 %v2755
    %v2951 = vunpack.c.l.b16 %v2756
    %v2952 = vunpack.c.h.b16 %v2756
    %v2953 = vunpack.c.l.b16 %v2757
    %v2954 = vunpack.c.h.b16 %v2757
    %v2955 = vunpack.c.l.b16 %v2758
    %v2956 = vunpack.c.h.b16 %v2758
    %v2957 = vunpack.c.l.b16 %v2759
    %v2958 = vunpack.c.h.b16 %v2759
    %v2959 = vunpack.c.l.b16 %v2760
    %v2960 = vunpack.c.h.b16 %v2760
    %v2961 = vunpack.c.l.b16 %v2761
    %v2962 = vunpack.c.h.b16 %v2761
    %v2963 = vunpack.c.l.b16 %v2762
    %v2964 = vunpack.c.h.b16 %v2762
    %v2965 = vunpack.c.l.b16 %v2763
    %v2966 = vunpack.c.h.b16 %v2763
    %v2967 = vunpack.c.l.b16 %v2764
    %v2968 = vunpack.c.h.b16 %v2764
    %v2969 = vunpack.c.l.b16 %v2765
    %v2970 = vunpack.c.h.b16 %v2765
    %v2971 = vpack.c.b16 %v2845, %v2843
    %v2972 = vpack.c.b16 %v2846, %v2844
    %v2973 = vpack.c.b16 %v2849, %v2847
    %v2974 = vpack.c.b16 %v2850, %v2848
    %v2975 = vpack.c.b16 %v2853, %v2851
    %v2976 = vpack.c.b16 %v2854, %v2852
    %v2977 = vpack.c.b16 %v2857, %v2855
    %v2978 = vpack.c.b16 %v2858, %v2856
    %v2979 = vpack.c.b16 %v2861, %v2859
    %v2980 = vpack.c.b16 %v2862, %v2860
    %v2981 = vpack.c.b16 %v2865, %v2863
    %v2982 = vpack.c.b16 %v2866, %v2864
    %v2983 = vpack.c.b16 %v2869, %v2867
    %v2984 = vpack.c.b16 %v2870, %v2868
    %v2985 = vpack.c.b16 %v2873, %v2871
    %v2986 = vpack.c.b16 %v2874, %v2872
    %v2987 = vpack.c.b16 %v2877, %v2875
    %v2988 = vpack.c.b16 %v2878, %v2876
    %v2989 = vpack.c.b16 %v2881, %v2879
    %v2990 = vpack.c.b16 %v2882, %v2880
    %v2991 = vpack.c.b16 %v2885, %v2883
    %v2992 = vpack.c.b16 %v2886, %v2884
    %v2993 = vpack.c.b16 %v2889, %v2887
    %v2994 = vpack.c.b16 %v2890, %v2888
    %v2995 = vpack.c.b16 %v2893, %v2891
    %v2996 = vpack.c.b16 %v2894, %v2892
    %v2997 = vpack.c.b16 %v2897, %v2895
    %v2998 = vpack.c.b16 %v2898, %v2896
    %v2999 = vpack.c.b16 %v2901, %v2899
    %v3000 = vpack.c.b16 %v2902, %v2900
    %v3001 = vpack.c.b16 %v2905, %v2903
    %v3002 = vpack.c.b16 %v2906, %v2904
    %v3003 = vpack.c.b16 %v2909, %v2907
    %v3004 = vpack.c.b16 %v2910, %v2908
    %v3005 = vpack.c.b16 %v2913, %v2911
    %v3006 = vpack.c.b16 %v2914, %v2912
    %v3007 = vpack.c.b16 %v2917, %v2915
    %v3008 = vpack.c.b16 %v2918, %v2916
    %v3009 = vpack.c.b16 %v2921, %v2919
    %v3010 = vpack.c.b16 %v2922, %v2920
    %v3011 = vpack.c.b16 %v2925, %v2923
    %v3012 = vpack.c.b16 %v2926, %v2924
    %v3013 = vpack.c.b16 %v2929, %v2927
    %v3014 = vpack.c.b16 %v2930, %v2928
    %v3015 = vpack.c.b16 %v2933, %v2931
    %v3016 = vpack.c.b16 %v2934, %v2932
    %v3017 = vpack.c.b16 %v2937, %v2935
    %v3018 = vpack.c.b16 %v2938, %v2936
    %v3019 = vpack.c.b16 %v2941, %v2939
    %v3020 = vpack.c.b16 %v2942, %v2940
    %v3021 = vpack.c.b16 %v2945, %v2943
    %v3022 = vpack.c.b16 %v2946, %v2944
    %v3023 = vpack.c.b16 %v2949, %v2947
    %v3024 = vpack.c.b16 %v2950, %v2948
    %v3025 = vpack.c.b16 %v2953, %v2951
    %v3026 = vpack.c.b16 %v2954, %v2952
    %v3027 = vpack.c.b16 %v2957, %v2955
    %v3028 = vpack.c.b16 %v2958, %v2956
    %v3029 = vpack.c.b16 %v2961, %v2959
    %v3030 = vpack.c.b16 %v2962, %v2960
    %v3031 = vpack.c.b16 %v2965, %v2963
    %v3032 = vpack.c.b16 %v2966, %v2964
    %v3033 = vpack.c.b16 %v2969, %v2967
    %v3034 = vpack.c.b16 %v2970, %v2968
    %3099 = vmatprep.subr.bf16.mxu0 %v2986
    %3100 = vmatpush1.bf16.msra.mxu0 %v2985
    %3101 = vmatprep.subr.bf16.mxu0 %v2984
    %3102 = vmatpush1.bf16.msra.mxu0 %v2983
    %3103 = vmatprep.subr.bf16.mxu0 %v2982
    %3104 = vmatpush1.bf16.msra.mxu0 %v2981
    %3105 = vmatprep.subr.bf16.mxu0 %v2980
    %3106 = vmatpush1.bf16.msra.mxu0 %v2979
    %3107 = vmatprep.subr.bf16.mxu0 %v2978
    %3108 = vmatpush1.bf16.msra.mxu0 %v2977
    %3109 = vmatprep.subr.bf16.mxu0 %v2976
    %3110 = vmatpush1.bf16.msra.mxu0 %v2975
    %3111 = vmatprep.subr.bf16.mxu0 %v2974
    %3112 = vmatpush1.bf16.msra.mxu0 %v2973
    %3113 = vmatprep.subr.bf16.mxu0 %v2972
    %3114 = vmatpush1.bf16.msra.mxu0 %v2971
    %3115 = vmatprep.subr.bf16.mxu0 %v3002
    %3116 = vmatpush2.bf16.msra.mxu0 %v3001
    %3117 = vmatprep.subr.bf16.mxu0 %v3000
    %3118 = vmatpush2.bf16.msra.mxu0 %v2999
    %3119 = vmatprep.subr.bf16.mxu0 %v2998
    %3120 = vmatpush2.bf16.msra.mxu0 %v2997
    %3121 = vmatprep.subr.bf16.mxu0 %v2996
    %3122 = vmatpush2.bf16.msra.mxu0 %v2995
    %3123 = vmatprep.subr.bf16.mxu0 %v2994
    %3124 = vmatpush2.bf16.msra.mxu0 %v2993
    %3125 = vmatprep.subr.bf16.mxu0 %v2992
    %3126 = vmatpush2.bf16.msra.mxu0 %v2991
    %3127 = vmatprep.subr.bf16.mxu0 %v2990
    %3128 = vmatpush2.bf16.msra.mxu0 %v2989
    %3129 = vmatprep.subr.bf16.mxu0 %v2988
    %3130 = vmatpush2.bf16.msra.mxu0 %v2987
    %3131 = vmatprep.mubr.bf16.mxu0 %v2699
    %3132 = vmatmul.mubr.bf16.gmra.mxu0 %v2698
    %v3133 = vpop.f32.mrf.mxu0
    %v3134 = vadd.f32 %v2772, %v3133
    %v3135 = vpop.f32.mrf.mxu0
    %v3136 = vadd.f32 %v2776, %v3135
    %v3137 = vpop.f32.mrf.mxu0
    %v3138 = vadd.f32 %v2772, %v3137
    %v3139 = vpop.f32.mrf.mxu0
    %v3140 = vadd.f32 %v2776, %v3139
    %3141 = vdwg.mxu0
    %3142 = vmatprep.subr.bf16.mxu0 %v3018
    %3143 = vmatpush1.bf16.msra.mxu0 %v3017
    %3144 = vmatprep.subr.bf16.mxu0 %v3016
    %3145 = vmatpush1.bf16.msra.mxu0 %v3015
    %3146 = vmatprep.subr.bf16.mxu0 %v3014
    %3147 = vmatpush1.bf16.msra.mxu0 %v3013
    %3148 = vmatprep.subr.bf16.mxu0 %v3012
    %3149 = vmatpush1.bf16.msra.mxu0 %v3011
    %3150 = vmatprep.subr.bf16.mxu0 %v3010
    %3151 = vmatpush1.bf16.msra.mxu0 %v3009
    %3152 = vmatprep.subr.bf16.mxu0 %v3008
    %3153 = vmatpush1.bf16.msra.mxu0 %v3007
    %3154 = vmatprep.subr.bf16.mxu0 %v3006
    %3155 = vmatpush1.bf16.msra.mxu0 %v3005
    %3156 = vmatprep.subr.bf16.mxu0 %v3004
    %3157 = vmatpush1.bf16.msra.mxu0 %v3003
    %3158 = vmatprep.subr.bf16.mxu0 %v3034
    %3159 = vmatpush2.bf16.msra.mxu0 %v3033
    %3160 = vmatprep.subr.bf16.mxu0 %v3032
    %3161 = vmatpush2.bf16.msra.mxu0 %v3031
    %3162 = vmatprep.subr.bf16.mxu0 %v3030
    %3163 = vmatpush2.bf16.msra.mxu0 %v3029
    %3164 = vmatprep.subr.bf16.mxu0 %v3028
    %3165 = vmatpush2.bf16.msra.mxu0 %v3027
    %3166 = vmatprep.subr.bf16.mxu0 %v3026
    %3167 = vmatpush2.bf16.msra.mxu0 %v3025
    %3168 = vmatprep.subr.bf16.mxu0 %v3024
    %3169 = vmatpush2.bf16.msra.mxu0 %v3023
    %3170 = vmatprep.subr.bf16.mxu0 %v3022
    %3171 = vmatpush2.bf16.msra.mxu0 %v3021
    %3172 = vmatprep.subr.bf16.mxu0 %v3020
    %3173 = vmatpush2.bf16.msra.mxu0 %v3019
    %3174 = vmatprep.mubr.bf16.mxu0 %v2701
    %3175 = vmatmul.mubr.bf16.gmra.mxu0 %v2700
    %v3176 = vpop.f32.mrf.mxu0
    %v3177 = vadd.f32 %v3134, %v3176
    %v3178 = vpop.f32.mrf.mxu0
    %v3179 = vadd.f32 %v3136, %v3178
    %v3180 = vpop.f32.mrf.mxu0
    %v3181 = vadd.f32 %v3138, %v3180
    %v3182 = vpop.f32.mrf.mxu0
    %v3183 = vadd.f32 %v3140, %v3182
    %3184 = vdwg.mxu0
    %v3185 = vmax.f32 %v3177, 0.0
    %v3186 = vmax.f32 %v3179, 0.0
    %v3187 = vmax.f32 %v3181, 0.0
    %v3188 = vmax.f32 %v3183, 0.0
    %v3189 = vpack.c.bf16 %v3187, %v3185
    %v3190 = vpack.c.bf16 %v3188, %v3186
    %v3191 = vld [vmem:[#allocation10] sm:$0xf]
    %v3192 = vld [vmem:[#allocation10 + $0x4] sm:$0xf]
    %v3193 = vld [vmem:[#allocation10 + $0x8] sm:$0xf]
    %v3194 = vld [vmem:[#allocation10 + $0xc] sm:$0xf]
    %v3195 = vld [vmem:[#allocation10 + $0x10] sm:$0xf]
    %v3196 = vld [vmem:[#allocation10 + $0x14] sm:$0xf]
    %v3197 = vld [vmem:[#allocation10 + $0x18] sm:$0xf]
    %v3198 = vld [vmem:[#allocation10 + $0x1c] sm:$0xf]
    %v3199 = vld [vmem:[#allocation10 + $0x20] sm:$0xf]
    %v3200 = vld [vmem:[#allocation10 + $0x24] sm:$0xf]
    %v3201 = vld [vmem:[#allocation10 + $0x28] sm:$0xf]
    %v3202 = vld [vmem:[#allocation10 + $0x2c] sm:$0xf]
    %v3203 = vld [vmem:[#allocation10 + $0x30] sm:$0xf]
    %v3204 = vld [vmem:[#allocation10 + $0x34] sm:$0xf]
    %v3205 = vld [vmem:[#allocation10 + $0x38] sm:$0xf]
    %v3206 = vld [vmem:[#allocation10 + $0x3c] sm:$0xf]
    %v3207 = vld [vmem:[#allocation10 + $0x40] sm:$0xf]
    %v3208 = vld [vmem:[#allocation10 + $0x44] sm:$0xf]
    %v3209 = vld [vmem:[#allocation10 + $0x48] sm:$0xf]
    %v3210 = vld [vmem:[#allocation10 + $0x4c] sm:$0xf]
    %v3211 = vld [vmem:[#allocation10 + $0x50] sm:$0xf]
    %v3212 = vld [vmem:[#allocation10 + $0x54] sm:$0xf]
    %v3213 = vld [vmem:[#allocation10 + $0x58] sm:$0xf]
    %v3214 = vld [vmem:[#allocation10 + $0x5c] sm:$0xf]
    %v3215 = vld [vmem:[#allocation10 + $0x60] sm:$0xf]
    %v3216 = vld [vmem:[#allocation10 + $0x64] sm:$0xf]
    %v3217 = vld [vmem:[#allocation10 + $0x68] sm:$0xf]
    %v3218 = vld [vmem:[#allocation10 + $0x6c] sm:$0xf]
    %v3219 = vld [vmem:[#allocation10 + $0x70] sm:$0xf]
    %v3220 = vld [vmem:[#allocation10 + $0x74] sm:$0xf]
    %v3221 = vld [vmem:[#allocation10 + $0x78] sm:$0xf]
    %v3222 = vld [vmem:[#allocation10 + $0x7c] sm:$0xf]
    %v3223 = vld [vmem:[%s7 + $0x3] ss:$0 sm:$0xff]
    %v3256 = vunpack.c.l.b16 %v3191
    %v3257 = vunpack.c.l.b16 %v3192
    %v3258 = vunpack.c.l.b16 %v3193
    %v3259 = vunpack.c.l.b16 %v3194
    %v3260 = vunpack.c.l.b16 %v3195
    %v3261 = vunpack.c.l.b16 %v3196
    %v3262 = vunpack.c.l.b16 %v3197
    %v3263 = vunpack.c.l.b16 %v3198
    %v3264 = vunpack.c.l.b16 %v3199
    %v3265 = vunpack.c.l.b16 %v3200
    %v3266 = vunpack.c.l.b16 %v3201
    %v3267 = vunpack.c.l.b16 %v3202
    %v3268 = vunpack.c.l.b16 %v3203
    %v3269 = vunpack.c.l.b16 %v3204
    %v3270 = vunpack.c.l.b16 %v3205
    %v3271 = vunpack.c.l.b16 %v3206
    %v3272 = vunpack.c.l.b16 %v3207
    %v3273 = vunpack.c.l.b16 %v3208
    %v3274 = vunpack.c.l.b16 %v3209
    %v3275 = vunpack.c.l.b16 %v3210
    %v3276 = vunpack.c.l.b16 %v3211
    %v3277 = vunpack.c.l.b16 %v3212
    %v3278 = vunpack.c.l.b16 %v3213
    %v3279 = vunpack.c.l.b16 %v3214
    %v3280 = vunpack.c.l.b16 %v3215
    %v3281 = vunpack.c.l.b16 %v3216
    %v3282 = vunpack.c.l.b16 %v3217
    %v3283 = vunpack.c.l.b16 %v3218
    %v3284 = vunpack.c.l.b16 %v3219
    %v3285 = vunpack.c.l.b16 %v3220
    %v3286 = vunpack.c.l.b16 %v3221
    %v3287 = vunpack.c.l.b16 %v3222
    %v3288 = vpack.c.b16 %v3257, %v3256
    %v3289 = vpack.c.b16 %v3259, %v3258
    %v3290 = vpack.c.b16 %v3261, %v3260
    %v3291 = vpack.c.b16 %v3263, %v3262
    %v3292 = vpack.c.b16 %v3265, %v3264
    %v3293 = vpack.c.b16 %v3267, %v3266
    %v3294 = vpack.c.b16 %v3269, %v3268
    %v3295 = vpack.c.b16 %v3271, %v3270
    %v3296 = vpack.c.b16 %v3273, %v3272
    %v3297 = vpack.c.b16 %v3275, %v3274
    %v3298 = vpack.c.b16 %v3277, %v3276
    %v3299 = vpack.c.b16 %v3279, %v3278
    %v3300 = vpack.c.b16 %v3281, %v3280
    %v3301 = vpack.c.b16 %v3283, %v3282
    %v3302 = vpack.c.b16 %v3285, %v3284
    %v3303 = vpack.c.b16 %v3287, %v3286
    %3320 = vmatprep.subr.bf16.mxu0 0
    %3321 = vmatpush1.bf16.msra.mxu0 %v3295
    %3322 = vmatprep.subr.bf16.mxu0 0
    %3323 = vmatpush1.bf16.msra.mxu0 %v3294
    %3324 = vmatprep.subr.bf16.mxu0 0
    %3325 = vmatpush1.bf16.msra.mxu0 %v3293
    %3326 = vmatprep.subr.bf16.mxu0 0
    %3327 = vmatpush1.bf16.msra.mxu0 %v3292
    %3328 = vmatprep.subr.bf16.mxu0 0
    %3329 = vmatpush1.bf16.msra.mxu0 %v3291
    %3330 = vmatprep.subr.bf16.mxu0 0
    %3331 = vmatpush1.bf16.msra.mxu0 %v3290
    %3332 = vmatprep.subr.bf16.mxu0 0
    %3333 = vmatpush1.bf16.msra.mxu0 %v3289
    %3334 = vmatprep.subr.bf16.mxu0 0
    %3335 = vmatpush1.bf16.msra.mxu0 %v3288
    %3336 = vmatprep.subr.bf16.mxu0 0
    %3337 = vmatpush2.bf16.msra.mxu0 %v3303
    %3338 = vmatprep.subr.bf16.mxu0 0
    %3339 = vmatpush2.bf16.msra.mxu0 %v3302
    %3340 = vmatprep.subr.bf16.mxu0 0
    %3341 = vmatpush2.bf16.msra.mxu0 %v3301
    %3342 = vmatprep.subr.bf16.mxu0 0
    %3343 = vmatpush2.bf16.msra.mxu0 %v3300
    %3344 = vmatprep.subr.bf16.mxu0 0
    %3345 = vmatpush2.bf16.msra.mxu0 %v3299
    %3346 = vmatprep.subr.bf16.mxu0 0
    %3347 = vmatpush2.bf16.msra.mxu0 %v3298
    %3348 = vmatprep.subr.bf16.mxu0 0
    %3349 = vmatpush2.bf16.msra.mxu0 %v3297
    %3350 = vmatprep.subr.bf16.mxu0 0
    %3351 = vmatpush2.bf16.msra.mxu0 %v3296
    %3352 = vmatprep.mubr.bf16.mxu0 %v3190
    %3353 = vmatmul.mubr.bf16.gmra.mxu0 %v3189
    %v3354 = vpop.f32.mrf.mxu0
    %v3355 = vadd.f32 %v3223, %v3354
    %v3356 = vpop.f32.mrf.mxu0
    %v3357 = vpop.f32.mrf.mxu0
    %v3358 = vadd.f32 %v3223, %v3357
    %v3359 = vpop.f32.mrf.mxu0
    %3360 = vdwg.mxu0
    %v3361 = vmax.f32 %v3355, 0.0
    %v3362 = vmax.f32 %v3358, 0.0
    %v3363 = vpack.c.bf16 %v3362, %v3361
    %v3364 = vld [vmem:[%s5] sm:$0xf]
    %v3365 = vld [vmem:[%s5 + $0x4] sm:$0xf]
    %v3366 = vld [vmem:[%s5 + $0x8] sm:$0xf]
    %v3367 = vld [vmem:[%s5 + $0xc] sm:$0xf]
    %v3368 = vld [vmem:[%s5 + $0x10] sm:$0xf]
    %v3369 = vld [vmem:[%s5 + $0x14] sm:$0xf]
    %v3370 = vld [vmem:[%s5 + $0x18] sm:$0xf]
    %v3371 = vld [vmem:[%s5 + $0x1c] sm:$0xf]
    %v3372 = vld [vmem:[%s5 + $0x20] sm:$0xf]
    %v3373 = vld [vmem:[%s5 + $0x24] sm:$0xf]
    %v3374 = vld [vmem:[%s5 + $0x28] sm:$0xf]
    %v3375 = vld [vmem:[%s5 + $0x2c] sm:$0xf]
    %v3376 = vld [vmem:[%s5 + $0x30] sm:$0xf]
    %v3377 = vld [vmem:[%s5 + $0x34] sm:$0xf]
    %v3378 = vld [vmem:[%s5 + $0x38] sm:$0xf]
    %v3379 = vld [vmem:[%s5 + $0x3c] sm:$0xf]
    %v3380 = vld [vmem:[%s7 + $0x4] ss:$0 sm:$0xff]
    %v3397 = vunpack.c.l.b16 %v3364
    %v3398 = vunpack.c.l.b16 %v3365
    %v3399 = vunpack.c.l.b16 %v3366
    %v3400 = vunpack.c.l.b16 %v3367
    %v3401 = vunpack.c.l.b16 %v3368
    %v3402 = vunpack.c.l.b16 %v3369
    %v3403 = vunpack.c.l.b16 %v3370
    %v3404 = vunpack.c.l.b16 %v3371
    %v3405 = vunpack.c.l.b16 %v3372
    %v3406 = vunpack.c.l.b16 %v3373
    %v3407 = vunpack.c.l.b16 %v3374
    %v3408 = vunpack.c.l.b16 %v3375
    %v3409 = vunpack.c.l.b16 %v3376
    %v3410 = vunpack.c.l.b16 %v3377
    %v3411 = vunpack.c.l.b16 %v3378
    %v3412 = vunpack.c.l.b16 %v3379
    %v3413 = vpack.c.b16 %v3398, %v3397
    %v3414 = vpack.c.b16 %v3400, %v3399
    %v3415 = vpack.c.b16 %v3402, %v3401
    %v3416 = vpack.c.b16 %v3404, %v3403
    %v3417 = vpack.c.b16 %v3406, %v3405
    %v3418 = vpack.c.b16 %v3408, %v3407
    %v3419 = vpack.c.b16 %v3410, %v3409
    %v3420 = vpack.c.b16 %v3412, %v3411
    %3429 = vmatprep.subr.bf16.mxu0 0
    %3430 = vmatpush1.bf16.msra.mxu0 %v3420
    %3431 = vmatprep.subr.bf16.mxu0 0
    %3432 = vmatpush1.bf16.msra.mxu0 %v3419
    %3433 = vmatprep.subr.bf16.mxu0 0
    %3434 = vmatpush1.bf16.msra.mxu0 %v3418
    %3435 = vmatprep.subr.bf16.mxu0 0
    %3436 = vmatpush1.bf16.msra.mxu0 %v3417
    %3437 = vmatprep.subr.bf16.mxu0 0
    %3438 = vmatpush1.bf16.msra.mxu0 %v3416
    %3439 = vmatprep.subr.bf16.mxu0 0
    %3440 = vmatpush1.bf16.msra.mxu0 %v3415
    %3441 = vmatprep.subr.bf16.mxu0 0
    %3442 = vmatpush1.bf16.msra.mxu0 %v3414
    %3443 = vmatprep.subr.bf16.mxu0 0
    %3444 = vmatpush1.bf16.msra.mxu0 %v3413
    %3445 = vmatprep.subr.bf16.mxu0 0
    %3446 = vmatpush2.bf16.msra.mxu0 0
    %3447 = vmatprep.subr.bf16.mxu0 0
    %3448 = vmatpush2.bf16.msra.mxu0 0
    %3449 = vmatprep.subr.bf16.mxu0 0
    %3450 = vmatpush2.bf16.msra.mxu0 0
    %3451 = vmatprep.subr.bf16.mxu0 0
    %3452 = vmatpush2.bf16.msra.mxu0 0
    %3453 = vmatprep.subr.bf16.mxu0 0
    %3454 = vmatpush2.bf16.msra.mxu0 0
    %3455 = vmatprep.subr.bf16.mxu0 0
    %3456 = vmatpush2.bf16.msra.mxu0 0
    %3457 = vmatprep.subr.bf16.mxu0 0
    %3458 = vmatpush2.bf16.msra.mxu0 0
    %3459 = vmatprep.subr.bf16.mxu0 0
    %3460 = vmatpush2.bf16.msra.mxu0 0
    %3461 = vmatprep.mubr.bf16.mxu0 0
    %3462 = vmatmul.mubr.bf16.gmra.mxu0 %v3363
    %v3463 = vpop.f32.mrf.mxu0
    %v3464 = vadd.f32 %v3380, %v3463
    %v3465 = vpop.f32.mrf.mxu0
    %v3466 = vpop.f32.mrf.mxu0
    %v3467 = vadd.f32 %v3380, %v3466
    %v3468 = vpop.f32.mrf.mxu0
    %3469 = vdwg.mxu0
    %v3470 = vtanh.pop %v3464
    %v3471 = vtanh.pop %v3467
    %v3472 = vpack.c.bf16 %v3471, %v3470
    %v3473 = vld [vmem:[%s6] sm:$0xf]
    %v3474 = vld [vmem:[%s6 + $0x4] sm:$0xf]
    %v3475 = vld [vmem:[%s6 + $0x8] sm:$0xf]
    %v3476 = vld [vmem:[%s6 + $0xc] sm:$0xf]
    %v3477 = vld [vmem:[%s6 + $0x10] sm:$0xf]
    %v3478 = vld [vmem:[%s6 + $0x14] sm:$0xf]
    %v3479 = vld [vmem:[%s6 + $0x18] sm:$0xf]
    %v3480 = vld [vmem:[%s6 + $0x1c] sm:$0xf]
    %v3481 = vld [vmem:[%s7 + $0x5] ss:$0 sm:$0xff]
    %v3490 = vunpack.c.l.b16 %v3473
    %v3491 = vunpack.c.l.b16 %v3474
    %v3492 = vunpack.c.l.b16 %v3475
    %v3493 = vunpack.c.l.b16 %v3476
    %v3494 = vunpack.c.l.b16 %v3477
    %v3495 = vunpack.c.l.b16 %v3478
    %v3496 = vunpack.c.l.b16 %v3479
    %v3497 = vunpack.c.l.b16 %v3480
    %v3498 = vpack.c.b16 %v3491, %v3490
    %v3499 = vpack.c.b16 %v3493, %v3492
    %v3500 = vpack.c.b16 %v3495, %v3494
    %v3501 = vpack.c.b16 %v3497, %v3496
    %vm3506 = vcmask 523264
    %v3508 = vsel %vm3506, %v3472, 0
    %3510 = vmatprep.subr.bf16.mxu0 0
    %3511 = vmatpush1.bf16.msra.mxu0 0
    %3512 = vmatprep.subr.bf16.mxu0 0
    %3513 = vmatpush1.bf16.msra.mxu0 0
    %3514 = vmatprep.subr.bf16.mxu0 0
    %3515 = vmatpush1.bf16.msra.mxu0 0
    %3516 = vmatprep.subr.bf16.mxu0 0
    %3517 = vmatpush1.bf16.msra.mxu0 0
    %3518 = vmatprep.subr.bf16.mxu0 0
    %3519 = vmatpush1.bf16.msra.mxu0 %v3501
    %3520 = vmatprep.subr.bf16.mxu0 0
    %3521 = vmatpush1.bf16.msra.mxu0 %v3500
    %3522 = vmatprep.subr.bf16.mxu0 0
    %3523 = vmatpush1.bf16.msra.mxu0 %v3499
    %3524 = vmatprep.subr.bf16.mxu0 0
    %3525 = vmatpush1.bf16.msra.mxu0 %v3498
    %3526 = vmatprep.subr.bf16.mxu0 0
    %3527 = vmatpush2.bf16.msra.mxu0 0
    %3528 = vmatprep.subr.bf16.mxu0 0
    %3529 = vmatpush2.bf16.msra.mxu0 0
    %3530 = vmatprep.subr.bf16.mxu0 0
    %3531 = vmatpush2.bf16.msra.mxu0 0
    %3532 = vmatprep.subr.bf16.mxu0 0
    %3533 = vmatpush2.bf16.msra.mxu0 0
    %3534 = vmatprep.subr.bf16.mxu0 0
    %3535 = vmatpush2.bf16.msra.mxu0 0
    %3536 = vmatprep.subr.bf16.mxu0 0
    %3537 = vmatpush2.bf16.msra.mxu0 0
    %3538 = vmatprep.subr.bf16.mxu0 0
    %3539 = vmatpush2.bf16.msra.mxu0 0
    %3540 = vmatprep.subr.bf16.mxu0 0
    %3541 = vmatpush2.bf16.msra.mxu0 0
    %3542 = vmatprep.mubr.bf16.mxu0 0
    %3543 = vmatmul.mubr.bf16.gmra.mxu0 %v3508
    %v3544 = vpop.f32.mrf.mxu0
    %v3545 = vadd.f32 %v3481, %v3544
    %v3546 = vpop.f32.mrf.mxu0
    %v3547 = vpop.f32.mrf.mxu0
    %v3548 = vadd.f32 %v3481, %v3547
    %v3549 = vpop.f32.mrf.mxu0
    %3550 = vdwg.mxu0
    %3551 = vst [vmem:[#allocation11] sm:$0xff] %v3545
    %3552 = vst [vmem:[#allocation11 + $0x8] sm:$0xff] %v3548
    // Predicated region
    $region54: #{tpu_custom_call.1} parent=1 // pred_check
      _
    $region55: #{tpu_custom_call.1} parent=1 // pred_check_branch
      %3554 = sbr.rel (0) target = $region57
    $region56: #{tpu_custom_call.1} parent=1 // pred_region
      %s3556 = ssub.s32 256, 256
      %3557 = vsyncadd [#allocation4], %s3556
      %s3558 = sshll.u32 [#allocation11], 4
      %s3559 = int_to_ptr.vmem [resolvable:$true] %s3558
      %3564 = dma.vmem_to_hbm [thread:$0]  %s3559, 256, %s8, [#allocation4], 128, 128, 8
    $region57: #{tpu_custom_call.1} parent=1 // pred_fallthru
      _
    // Predicated region
    $region58: #{tpu_custom_call.1} parent=1 // pred_check
      _
    $region59: #{tpu_custom_call.1} parent=1 // pred_check_branch
      %3566 = sbr.rel (0) target = $region61
    $region60: #{tpu_custom_call.1} parent=1 // pred_region
      %3567 = dma.done [#allocation4], 256
    $region61: #{tpu_custom_call.1} parent=1 // pred_fallthru
      _
    %3568 = vsyncpa [#allocation3], 1
    %3569 = vsyncpa [#allocation6], 1
    %3570 = vsyncpa [#allocation9], 1
    %3571 = vsyncpa [#allocation4], 1

</llo_original>
